<compile_context>
chip_gen: v5e
topology: v5e:2x2
jax: 0.10.0
libtpu: 0.0.40
codegen_flags: <defaults>
</compile_context>

<pallas_src>
import functools

import jax
import jax.numpy as jnp
from jax import lax
from jax.experimental import pallas as pl
from jax.experimental.pallas import tpu as pltpu


# ---------------------------------------------------------------------------
# parameter-slab layout (shared between the wrapper packer and the kernel)
# ---------------------------------------------------------------------------
def _col_layout(hi):
    off = {}
    i = 0
    off['dw1_taps'] = i; i += 9
    off['dw1_b'] = i; i += 1
    off['bn1_g'] = i; i += 1
    off['bn1_b'] = i; i += 1
    off['c1_w'] = i; i += hi          # interleaved (even output rows)
    off['c2a_w'] = i; i += hi
    off['c2a_b'] = i; i += 1
    off['c2a_g'] = i; i += 1
    off['c2a_bb'] = i; i += 1
    off['dw2_taps'] = i; i += 9
    off['dw2_b'] = i; i += 1
    off['bn2_g'] = i; i += 1
    off['bn2_b'] = i; i += 1
    off['c2b_w'] = i; i += hi          # interleaved (odd output rows)
    off['fin_b'] = i; i += 1           # interleaved c1/c2b conv bias
    off['fin_g'] = i; i += 1           # interleaved final BN gamma
    off['fin_bb'] = i; i += 1          # interleaved final BN beta
    off['ncols'] = i
    return off


def _pack_param_slab(p, cin, cout):
    """Pack every parameter into one (rows, ncols) f32 slab of per-channel columns."""
    hi = cin // 2
    off = _col_layout(hi)
    rmax = max(cout, hi)
    slab = jnp.zeros((rmax, off['ncols']), jnp.float32)

    def put(s, idx, vec):
        vec = vec.astype(jnp.float32)
        return s.at[:vec.shape[0], idx].set(vec)

    for ki in range(3):
        for kj in range(3):
            slab = put(slab, off['dw1_taps'] + ki * 3 + kj, p['dw1_w'][:, 0, ki, kj])
            slab = put(slab, off['dw2_taps'] + ki * 3 + kj, p['dw2_w'][:, 0, ki, kj])
    slab = put(slab, off['dw1_b'], p['dw1_b'])
    slab = put(slab, off['bn1_g'], p['bn1_g'])
    slab = put(slab, off['bn1_b'], p['bn1_b'])
    slab = put(slab, off['dw2_b'], p['dw2_b'])
    slab = put(slab, off['bn2_g'], p['bn2_g'])
    slab = put(slab, off['bn2_b'], p['bn2_b'])
    slab = put(slab, off['c2a_b'], p['c2a_b'])
    slab = put(slab, off['c2a_g'], p['c2a_g'])
    slab = put(slab, off['c2a_bb'], p['c2a_bb'])
    for c in range(hi):
        slab = put(slab, off['c2a_w'] + c, p['c2a_w'][:, c, 0, 0])
        # ChannelShuffle(2) folded into the final-conv weight layout:
        #   out[2k]   = branch1 channel k  -> c1 weights on even rows
        #   out[2k+1] = branch2 channel k  -> c2b weights on odd rows
        slab = slab.at[0::2, off['c1_w'] + c].set(p['c1_w'][:, c, 0, 0].astype(jnp.float32))
        slab = slab.at[1::2, off['c2b_w'] + c].set(p['c2b_w'][:, c, 0, 0].astype(jnp.float32))
    slab = slab.at[0::2, off['fin_b']].set(p['c1_b'].astype(jnp.float32))
    slab = slab.at[1::2, off['fin_b']].set(p['c2b_b'].astype(jnp.float32))
    slab = slab.at[0::2, off['fin_g']].set(p['c1_g'].astype(jnp.float32))
    slab = slab.at[1::2, off['fin_g']].set(p['c2b_g'].astype(jnp.float32))
    slab = slab.at[0::2, off['fin_bb']].set(p['c1_bb'].astype(jnp.float32))
    slab = slab.at[1::2, off['fin_bb']].set(p['c2b_bb'].astype(jnp.float32))
    return slab


# ---------------------------------------------------------------------------
# kernel factory
# ---------------------------------------------------------------------------
def _make_kernel(n, cin, cout, h, w):
    hi = cin // 2
    L = n * h * w
    HW = h * w
    off = _col_layout(hi)
    eps = 1e-5
    use_mxu = hi >= 8          # tiny channel counts stay on the VPU loop

    def kernel(x_ref, par_ref, o_ref):
        def colv(idx, rows):                       # (rows, 1) per-channel column
            return par_ref[0:rows, idx:idx + 1]

        def silu(v, approx=True):                  # exp (EUP) + reciprocal (EUP)
            return v * pl.reciprocal(1.0 + jnp.exp(-v), approx=approx)

        def bn_fold(t, g_idx, b_idx, rows):
            # training-mode BN (biased variance) as per-channel (scale, shift);
            # single-pass stats: var = E[x^2] - mean^2 (no (t - mean) temp).
            mean = jnp.mean(t, axis=1, keepdims=True)
            ex2 = jnp.mean(t * t, axis=1, keepdims=True)
            var = jnp.maximum(ex2 - mean * mean, 0.0)
            scale = colv(g_idx, rows) * lax.rsqrt(var + eps)
            shift = colv(b_idx, rows) - mean * scale
            return scale, shift

        # ---- tap-validity masks (shared by both depthwise convs).  They zero
        # every position where a lane-roll would read across an image edge
        # (in-image zero padding, cross-image wrap, cross-array wrap). ----
        p_lane = lax.broadcasted_iota(jnp.int32, (1, L), 1)
        q = p_lane % HW                             # flat position inside one image
        ww = p_lane % w                             # column inside one row
        f32 = lambda b: b.astype(jnp.float32)
        row_m = {-1: f32(q >= w), 0: None, 1: f32(q < (h - 1) * w)}
        col_m = {-1: f32(ww >= 1), 0: None, 1: f32(ww <= w - 2)}
        masks = {}
        for di in (-1, 0, 1):
            for dj in (-1, 0, 1):
                m, c = row_m[di], col_m[dj]
                if m is None:
                    m = c
                elif c is not None:
                    m = m * c
                masks[(di, dj)] = m

        def dwconv3x3(t, tap0, bias_idx):
            # depthwise 3x3, stride 1, pad 1 on the flattened (hi, L) slab:
            # 8 lane-rolls (XLU) of the live slab + VPU FMAs; no halo scratch,
            # no VMEM->VMEM copies, no unaligned shifted loads.
            taps = par_ref[0:hi, tap0:tap0 + 9]     # one block load of all 9 taps
            acc = t * taps[:, 4:5]                  # centre tap: no shift, no mask
            for ki in range(3):
                for kj in range(3):
                    di, dj = ki - 1, kj - 1
                    if di == 0 and dj == 0:
                        continue
                    d = di * w + dj                 # out[p] needs in[p + d]
                    sh = pltpu.roll(t, shift=(-d) % L, axis=1)
                    acc = acc + (sh * masks[(di, dj)]) * taps[:, ki * 3 + kj:ki * 3 + kj + 1]
            return acc + colv(bias_idx, hi)

        x1 = x_ref[0:hi, :]                         # torch chunk(2, dim=1)
        x2 = x_ref[hi:2 * hi, :]

        # ---------- branch 1: dwconv -> BN ----------
        d1 = dwconv3x3(x1, off['dw1_taps'], off['dw1_b'])
        s1, t1 = bn_fold(d1, off['bn1_g'], off['bn1_b'], hi)
        b1 = s1 * d1 + t1                           # (hi, L)

        # ---------- branch 2: 1x1 -> BN+SiLU -> dwconv -> BN ----------
        w_c2a = par_ref[0:hi, off['c2a_w']:off['c2a_w'] + hi]
        if use_mxu:
            a2 = jnp.dot(w_c2a, x2, preferred_element_type=jnp.float32)
        else:
            a2 = None
            for c in range(hi):
                term = w_c2a[:, c:c + 1] * x2[c:c + 1, :]
                a2 = term if a2 is None else a2 + term
        a2 = a2 + colv(off['c2a_b'], hi)
        s2a, t2a = bn_fold(a2, off['c2a_g'], off['c2a_bb'], hi)
        a2 = silu(a2 * s2a + t2a)
        d2 = dwconv3x3(a2, off['dw2_taps'], off['dw2_b'])
        s2, t2 = bn_fold(d2, off['bn2_g'], off['bn2_b'], hi)
        b2 = s2 * d2 + t2                           # (hi, L)

        # ---------- final 1x1 convs; ChannelShuffle(2) folded into the packed
        # weight rows (even rows = branch1/c1, odd rows = branch2/c2b) ----------
        w1 = par_ref[0:cout, off['c1_w']:off['c1_w'] + hi]
        w2 = par_ref[0:cout, off['c2b_w']:off['c2b_w'] + hi]
        if use_mxu:
            out_pre = (jnp.dot(w1, b1, preferred_element_type=jnp.float32)
                       + jnp.dot(w2, b2, preferred_element_type=jnp.float32))
        else:
            out_pre = None
            for c in range(hi):
                term = (w1[:, c:c + 1] * b1[c:c + 1, :]
                        + w2[:, c:c + 1] * b2[c:c + 1, :])
                out_pre = term if out_pre is None else out_pre + term
        out_pre = out_pre + colv(off['fin_b'], cout)   # (cout, L)

        # ---------- final BN + SiLU (exact reciprocal) on the output slab ----------
        sf, tf = bn_fold(out_pre, off['fin_g'], off['fin_bb'], cout)
        o_ref[...] = silu(out_pre * sf + tf, approx=False)

    return kernel


# ---------------------------------------------------------------------------
# wrapper
# ---------------------------------------------------------------------------
@functools.partial(jax.jit, static_argnames=('out_channels',))
def residual_bottleneck(x, params, *, out_channels):
    n, cin, h, w = x.shape
    cout = out_channels
    L = n * h * w

    # lane-dense layout: channels on sublanes, flattened batch*spatial on lanes.
    # TODO(synk): at realistic sizes this relayout should move into a per-image
    # gridded kernel (BlockSpec index_map) to avoid the extra HBM round trip.
    x2d = jnp.transpose(x, (1, 0, 2, 3)).reshape(cin, L).astype(jnp.float32)
    slab = _pack_param_slab(params, cin, cout)

    kernel = _make_kernel(n, cin, cout, h, w)
    vmem_spec = pl.BlockSpec(memory_space=pltpu.MemorySpace.VMEM)
    out2d = pl.pallas_call(
        kernel,
        out_shape=jax.ShapeDtypeStruct((cout, L), jnp.float32),
        in_specs=[vmem_spec, vmem_spec],
        out_specs=vmem_spec,
        compiler_params=pltpu.CompilerParams(vmem_limit_bytes=32 * 1024 * 1024),
    )(x2d, slab)

    return jnp.transpose(out2d.reshape(cout, n, h, w), (1, 0, 2, 3))


# ---------------------------------------------------------------------------
# parameter init + pure-JAX reference (mirrors the PyTorch module)
# ---------------------------------------------------------------------------
def init_params(key, cin, cout):
    hi, ho = cin // 2, cout // 2
    ks = jax.random.split(key, 20)
    nrm = lambda k, s, scale=0.1: scale * jax.random.normal(k, s, jnp.float32)
    return {
        'dw1_w': nrm(ks[0], (hi, 1, 3, 3)), 'dw1_b': nrm(ks[1], (hi,)),
        'bn1_g': 1.0 + nrm(ks[2], (hi,)),   'bn1_b': nrm(ks[3], (hi,)),
        'c1_w': nrm(ks[4], (ho, hi, 1, 1)), 'c1_b': nrm(ks[5], (ho,)),
        'c1_g': 1.0 + nrm(ks[6], (ho,)),    'c1_bb': nrm(ks[7], (ho,)),
        'c2a_w': nrm(ks[8], (hi, hi, 1, 1)), 'c2a_b': nrm(ks[9], (hi,)),
        'c2a_g': 1.0 + nrm(ks[10], (hi,)),  'c2a_bb': nrm(ks[11], (hi,)),
        'dw2_w': nrm(ks[12], (hi, 1, 3, 3)), 'dw2_b': nrm(ks[13], (hi,)),
        'bn2_g': 1.0 + nrm(ks[14], (hi,)),  'bn2_b': nrm(ks[15], (hi,)),
        'c2b_w': nrm(ks[16], (ho, hi, 1, 1)), 'c2b_b': nrm(ks[17], (ho,)),
        'c2b_g': 1.0 + nrm(ks[18], (ho,)),  'c2b_bb': nrm(ks[19], (ho,)),
    }


def _ref_forward(x, p):
    eps = 1e-5

    def bn(t, g, b):
        mean = t.mean(axis=(0, 2, 3), keepdims=True)
        var = jnp.square(t - mean).mean(axis=(0, 2, 3), keepdims=True)
        return (t - mean) * lax.rsqrt(var + eps) * g.reshape(1, -1, 1, 1) + b.reshape(1, -1, 1, 1)

    def silu(t):
        return t * jax.nn.sigmoid(t)

    def conv1x1(t, w, b):
        return jnp.einsum('nchw,oc->nohw', t, w[:, :, 0, 0]) + b.reshape(1, -1, 1, 1)

    def dwconv3x3(t, w, b):
        _, _, H, W = t.shape
        tp = jnp.pad(t, ((0, 0), (0, 0), (1, 1), (1, 1)))
        out = jnp.zeros_like(t)
        for ki in range(3):
            for kj in range(3):
                out = out + tp[:, :, ki:ki + H, kj:kj + W] * w[:, 0, ki, kj].reshape(1, -1, 1, 1)
        return out + b.reshape(1, -1, 1, 1)

    hi = x.shape[1] // 2
    x1, x2 = x[:, :hi], x[:, hi:]
    b1 = dwconv3x3(x1, p['dw1_w'], p['dw1_b'])
    b1 = bn(b1, p['bn1_g'], p['bn1_b'])
    b1 = silu(bn(conv1x1(b1, p['c1_w'], p['c1_b']), p['c1_g'], p['c1_bb']))
    b2 = silu(bn(conv1x1(x2, p['c2a_w'], p['c2a_b']), p['c2a_g'], p['c2a_bb']))
    b2 = dwconv3x3(b2, p['dw2_w'], p['dw2_b'])
    b2 = bn(b2, p['bn2_g'], p['bn2_b'])
    b2 = silu(bn(conv1x1(b2, p['c2b_w'], p['c2b_b']), p['c2b_g'], p['c2b_bb']))
    y = jnp.concatenate([b1, b2], axis=1)
    n, c, H, W = y.shape
    return y.reshape(n, 2, c // 2, H, W).transpose(0, 2, 1, 3, 4).reshape(n, c, H, W)


if __name__ == "__main__":
    key = jax.random.PRNGKey(0)
    kx, kp = jax.random.split(key)

    N, CIN, COUT, H, W = 2, 4, 8, 16, 16
    x = jax.random.normal(kx, (N, CIN, H, W), jnp.float32)
    params = init_params(kp, CIN, COUT)

    out = residual_bottleneck(x, params, out_channels=COUT)
    out = jax.block_until_ready(out)

    assert out.shape == (N, COUT, H, W), out.shape
    assert bool(jnp.all(jnp.isfinite(out)))

    ref = _ref_forward(x, params)
    err = float(jnp.max(jnp.abs(out - ref)))
    # tolerance absorbs the EUP approximate-reciprocal used in the inner SiLUs
    assert err < 5e-2, f"max abs diff vs reference: {err}"
    print("KERNEL_OK")
</pallas_src>

<mosaic_0001>
module attributes {stable_mosaic.version = 11 : i64} {
  func.func @kernel(%arg0: memref<4x512xf32, #tpu.memory_space<vmem>>, %arg1: memref<8x36xf32, #tpu.memory_space<vmem>>, %arg2: memref<8x512xf32, #tpu.memory_space<vmem>>) attributes {dimension_semantics = [], scalar_prefetch = 0 : i64, scratch_operands = 0 : i64, tpu.core_type = #tpu.core_type<tc>} {
    %0 = tpu.iota {dimensions = array<i32: 1>} : vector<1x512xi32>
    %c256_i32 = arith.constant 256 : i32
    %c0_i32 = arith.constant 0 : i32
    %1 = arith.cmpi eq, %c256_i32, %c0_i32 : i32
    %c1_i32 = arith.constant 1 : i32
    %2 = arith.select %1, %c1_i32, %c256_i32 : i32
    %3 = vector.broadcast %2 : i32 to vector<1x512xi32>
    %4 = arith.remsi %0, %3 : vector<1x512xi32>
    %c0_i32_0 = arith.constant 0 : i32
    %5 = vector.broadcast %c0_i32_0 : i32 to vector<1x512xi32>
    %6 = arith.cmpi ne, %4, %5 : vector<1x512xi32>
    %c0_i32_1 = arith.constant 0 : i32
    %7 = vector.broadcast %c0_i32_1 : i32 to vector<1x512xi32>
    %8 = arith.cmpi slt, %4, %7 : vector<1x512xi32>
    %c0_i32_2 = arith.constant 0 : i32
    %9 = arith.cmpi slt, %2, %c0_i32_2 : i32
    %10 = vector.broadcast %9 : i1 to vector<1x512xi1>
    %11 = vector.broadcast %10 : vector<1x512xi1> to vector<1x512xi1>
    %12 = arith.xori %8, %11 : vector<1x512xi1>
    %13 = arith.andi %12, %6 : vector<1x512xi1>
    %14 = vector.broadcast %2 : i32 to vector<1x512xi32>
    %15 = arith.addi %4, %14 : vector<1x512xi32>
    %16 = arith.select %13, %15, %4 : vector<1x512xi1>, vector<1x512xi32>
    %c16_i32 = arith.constant 16 : i32
    %c0_i32_3 = arith.constant 0 : i32
    %17 = arith.cmpi eq, %c16_i32, %c0_i32_3 : i32
    %c1_i32_4 = arith.constant 1 : i32
    %18 = arith.select %17, %c1_i32_4, %c16_i32 : i32
    %19 = vector.broadcast %18 : i32 to vector<1x512xi32>
    %20 = arith.remsi %0, %19 : vector<1x512xi32>
    %c0_i32_5 = arith.constant 0 : i32
    %21 = vector.broadcast %c0_i32_5 : i32 to vector<1x512xi32>
    %22 = arith.cmpi ne, %20, %21 : vector<1x512xi32>
    %c0_i32_6 = arith.constant 0 : i32
    %23 = vector.broadcast %c0_i32_6 : i32 to vector<1x512xi32>
    %24 = arith.cmpi slt, %20, %23 : vector<1x512xi32>
    %c0_i32_7 = arith.constant 0 : i32
    %25 = arith.cmpi slt, %18, %c0_i32_7 : i32
    %26 = vector.broadcast %25 : i1 to vector<1x512xi1>
    %27 = vector.broadcast %26 : vector<1x512xi1> to vector<1x512xi1>
    %28 = arith.xori %24, %27 : vector<1x512xi1>
    %29 = arith.andi %28, %22 : vector<1x512xi1>
    %30 = vector.broadcast %18 : i32 to vector<1x512xi32>
    %31 = arith.addi %20, %30 : vector<1x512xi32>
    %32 = arith.select %29, %31, %20 : vector<1x512xi1>, vector<1x512xi32>
    %c16_i32_8 = arith.constant 16 : i32
    %33 = vector.broadcast %c16_i32_8 : i32 to vector<1x512xi32>
    %34 = arith.cmpi sge, %16, %33 : vector<1x512xi32>
    %35 = arith.extui %34 : vector<1x512xi1> to vector<1x512xi32>
    %36 = arith.sitofp %35 : vector<1x512xi32> to vector<1x512xf32>
    %c240_i32 = arith.constant 240 : i32
    %37 = vector.broadcast %c240_i32 : i32 to vector<1x512xi32>
    %38 = arith.cmpi slt, %16, %37 : vector<1x512xi32>
    %39 = arith.extui %38 : vector<1x512xi1> to vector<1x512xi32>
    %40 = arith.sitofp %39 : vector<1x512xi32> to vector<1x512xf32>
    %c1_i32_9 = arith.constant 1 : i32
    %41 = vector.broadcast %c1_i32_9 : i32 to vector<1x512xi32>
    %42 = arith.cmpi sge, %32, %41 : vector<1x512xi32>
    %43 = arith.extui %42 : vector<1x512xi1> to vector<1x512xi32>
    %44 = arith.sitofp %43 : vector<1x512xi32> to vector<1x512xf32>
    %c14_i32 = arith.constant 14 : i32
    %45 = vector.broadcast %c14_i32 : i32 to vector<1x512xi32>
    %46 = arith.cmpi sle, %32, %45 : vector<1x512xi32>
    %47 = arith.extui %46 : vector<1x512xi1> to vector<1x512xi32>
    %48 = arith.sitofp %47 : vector<1x512xi32> to vector<1x512xf32>
    %49 = arith.mulf %36, %44 : vector<1x512xf32>
    %50 = arith.mulf %36, %48 : vector<1x512xf32>
    %51 = arith.mulf %40, %44 : vector<1x512xf32>
    %52 = arith.mulf %40, %48 : vector<1x512xf32>
    %c0 = arith.constant 0 : index
    %c0_10 = arith.constant 0 : index
    %53 = vector.load %arg0[%c0, %c0_10] : memref<4x512xf32, #tpu.memory_space<vmem>>, vector<2x512xf32>
    %c2 = arith.constant 2 : index
    %c0_11 = arith.constant 0 : index
    %54 = vector.load %arg0[%c2, %c0_11] : memref<4x512xf32, #tpu.memory_space<vmem>>, vector<2x512xf32>
    %c0_12 = arith.constant 0 : index
    %c0_13 = arith.constant 0 : index
    %55 = vector.load %arg1[%c0_12, %c0_13] : memref<8x36xf32, #tpu.memory_space<vmem>>, vector<2x9xf32>
    %56 = vector.extract_strided_slice %55 {offsets = [0, 4], sizes = [2, 1], strides = [1, 1]} : vector<2x9xf32> to vector<2x1xf32>
    %57 = vector.broadcast %56 : vector<2x1xf32> to vector<2x512xf32>
    %58 = arith.mulf %53, %57 : vector<2x512xf32>
    %c17_i32 = arith.constant 17 : i32
    %59 = tpu.dynamic_rotate %53 by %c17_i32 dim 1 : vector<2x512xf32>, i32 -> vector<2x512xf32>
    %60 = vector.broadcast %49 : vector<1x512xf32> to vector<2x512xf32>
    %61 = arith.mulf %59, %60 : vector<2x512xf32>
    %62 = vector.extract_strided_slice %55 {offsets = [0, 0], sizes = [2, 1], strides = [1, 1]} : vector<2x9xf32> to vector<2x1xf32>
    %63 = vector.broadcast %62 : vector<2x1xf32> to vector<2x512xf32>
    %64 = arith.mulf %61, %63 : vector<2x512xf32>
    %65 = arith.addf %58, %64 : vector<2x512xf32>
    %c16_i32_14 = arith.constant 16 : i32
    %66 = tpu.dynamic_rotate %53 by %c16_i32_14 dim 1 : vector<2x512xf32>, i32 -> vector<2x512xf32>
    %67 = vector.broadcast %36 : vector<1x512xf32> to vector<2x512xf32>
    %68 = arith.mulf %66, %67 : vector<2x512xf32>
    %69 = vector.extract_strided_slice %55 {offsets = [0, 1], sizes = [2, 1], strides = [1, 1]} : vector<2x9xf32> to vector<2x1xf32>
    %70 = vector.broadcast %69 : vector<2x1xf32> to vector<2x512xf32>
    %71 = arith.mulf %68, %70 : vector<2x512xf32>
    %72 = arith.addf %65, %71 : vector<2x512xf32>
    %c15_i32 = arith.constant 15 : i32
    %73 = tpu.dynamic_rotate %53 by %c15_i32 dim 1 : vector<2x512xf32>, i32 -> vector<2x512xf32>
    %74 = vector.broadcast %50 : vector<1x512xf32> to vector<2x512xf32>
    %75 = arith.mulf %73, %74 : vector<2x512xf32>
    %76 = vector.extract_strided_slice %55 {offsets = [0, 2], sizes = [2, 1], strides = [1, 1]} : vector<2x9xf32> to vector<2x1xf32>
    %77 = vector.broadcast %76 : vector<2x1xf32> to vector<2x512xf32>
    %78 = arith.mulf %75, %77 : vector<2x512xf32>
    %79 = arith.addf %72, %78 : vector<2x512xf32>
    %c1_i32_15 = arith.constant 1 : i32
    %80 = tpu.dynamic_rotate %53 by %c1_i32_15 dim 1 : vector<2x512xf32>, i32 -> vector<2x512xf32>
    %81 = vector.broadcast %44 : vector<1x512xf32> to vector<2x512xf32>
    %82 = arith.mulf %80, %81 : vector<2x512xf32>
    %83 = vector.extract_strided_slice %55 {offsets = [0, 3], sizes = [2, 1], strides = [1, 1]} : vector<2x9xf32> to vector<2x1xf32>
    %84 = vector.broadcast %83 : vector<2x1xf32> to vector<2x512xf32>
    %85 = arith.mulf %82, %84 : vector<2x512xf32>
    %86 = arith.addf %79, %85 : vector<2x512xf32>
    %c511_i32 = arith.constant 511 : i32
    %87 = tpu.dynamic_rotate %53 by %c511_i32 dim 1 : vector<2x512xf32>, i32 -> vector<2x512xf32>
    %88 = vector.broadcast %48 : vector<1x512xf32> to vector<2x512xf32>
    %89 = arith.mulf %87, %88 : vector<2x512xf32>
    %90 = vector.extract_strided_slice %55 {offsets = [0, 5], sizes = [2, 1], strides = [1, 1]} : vector<2x9xf32> to vector<2x1xf32>
    %91 = vector.broadcast %90 : vector<2x1xf32> to vector<2x512xf32>
    %92 = arith.mulf %89, %91 : vector<2x512xf32>
    %93 = arith.addf %86, %92 : vector<2x512xf32>
    %c497_i32 = arith.constant 497 : i32
    %94 = tpu.dynamic_rotate %53 by %c497_i32 dim 1 : vector<2x512xf32>, i32 -> vector<2x512xf32>
    %95 = vector.broadcast %51 : vector<1x512xf32> to vector<2x512xf32>
    %96 = arith.mulf %94, %95 : vector<2x512xf32>
    %97 = vector.extract_strided_slice %55 {offsets = [0, 6], sizes = [2, 1], strides = [1, 1]} : vector<2x9xf32> to vector<2x1xf32>
    %98 = vector.broadcast %97 : vector<2x1xf32> to vector<2x512xf32>
    %99 = arith.mulf %96, %98 : vector<2x512xf32>
    %100 = arith.addf %93, %99 : vector<2x512xf32>
    %c496_i32 = arith.constant 496 : i32
    %101 = tpu.dynamic_rotate %53 by %c496_i32 dim 1 : vector<2x512xf32>, i32 -> vector<2x512xf32>
    %102 = vector.broadcast %40 : vector<1x512xf32> to vector<2x512xf32>
    %103 = arith.mulf %101, %102 : vector<2x512xf32>
    %104 = vector.extract_strided_slice %55 {offsets = [0, 7], sizes = [2, 1], strides = [1, 1]} : vector<2x9xf32> to vector<2x1xf32>
    %105 = vector.broadcast %104 : vector<2x1xf32> to vector<2x512xf32>
    %106 = arith.mulf %103, %105 : vector<2x512xf32>
    %107 = arith.addf %100, %106 : vector<2x512xf32>
    %c495_i32 = arith.constant 495 : i32
    %108 = tpu.dynamic_rotate %53 by %c495_i32 dim 1 : vector<2x512xf32>, i32 -> vector<2x512xf32>
    %109 = vector.broadcast %52 : vector<1x512xf32> to vector<2x512xf32>
    %110 = arith.mulf %108, %109 : vector<2x512xf32>
    %111 = vector.extract_strided_slice %55 {offsets = [0, 8], sizes = [2, 1], strides = [1, 1]} : vector<2x9xf32> to vector<2x1xf32>
    %112 = vector.broadcast %111 : vector<2x1xf32> to vector<2x512xf32>
    %113 = arith.mulf %110, %112 : vector<2x512xf32>
    %114 = arith.addf %107, %113 : vector<2x512xf32>
    %c0_16 = arith.constant 0 : index
    %c9 = arith.constant 9 : index
    %115 = vector.load %arg1[%c0_16, %c9] : memref<8x36xf32, #tpu.memory_space<vmem>>, vector<2x1xf32>
    %116 = vector.broadcast %115 : vector<2x1xf32> to vector<2x512xf32>
    %117 = arith.addf %114, %116 : vector<2x512xf32>
    %cst = arith.constant dense<0.000000e+00> : vector<2xf32>
    %118 = vector.multi_reduction <add>, %117, %cst [1] : vector<2x512xf32> to vector<2xf32>
    %119 = vector.shape_cast %118 : vector<2xf32> to vector<2x1xf32>
    %cst_17 = arith.constant 5.120000e+02 : f32
    %120 = vector.broadcast %cst_17 : f32 to vector<2x1xf32>
    %121 = arith.divf %119, %120 : vector<2x1xf32>
    %122 = arith.mulf %117, %117 : vector<2x512xf32>
    %cst_18 = arith.constant dense<0.000000e+00> : vector<2xf32>
    %123 = vector.multi_reduction <add>, %122, %cst_18 [1] : vector<2x512xf32> to vector<2xf32>
    %124 = vector.shape_cast %123 : vector<2xf32> to vector<2x1xf32>
    %cst_19 = arith.constant 5.120000e+02 : f32
    %125 = vector.broadcast %cst_19 : f32 to vector<2x1xf32>
    %126 = arith.divf %124, %125 : vector<2x1xf32>
    %127 = arith.mulf %121, %121 : vector<2x1xf32>
    %128 = arith.subf %126, %127 : vector<2x1xf32>
    %cst_20 = arith.constant 0.000000e+00 : f32
    %129 = vector.broadcast %cst_20 : f32 to vector<2x1xf32>
    %130 = arith.maximumf %128, %129 : vector<2x1xf32>
    %c0_21 = arith.constant 0 : index
    %c10 = arith.constant 10 : index
    %131 = vector.load %arg1[%c0_21, %c10] : memref<8x36xf32, #tpu.memory_space<vmem>>, vector<2x1xf32>
    %cst_22 = arith.constant 9.99999974E-6 : f32
    %132 = vector.broadcast %cst_22 : f32 to vector<2x1xf32>
    %133 = arith.addf %130, %132 : vector<2x1xf32>
    %134 = math.rsqrt %133 : vector<2x1xf32>
    %135 = arith.mulf %131, %134 : vector<2x1xf32>
    %c0_23 = arith.constant 0 : index
    %c11 = arith.constant 11 : index
    %136 = vector.load %arg1[%c0_23, %c11] : memref<8x36xf32, #tpu.memory_space<vmem>>, vector<2x1xf32>
    %137 = arith.mulf %121, %135 : vector<2x1xf32>
    %138 = arith.subf %136, %137 : vector<2x1xf32>
    %139 = vector.broadcast %135 : vector<2x1xf32> to vector<2x512xf32>
    %140 = arith.mulf %139, %117 : vector<2x512xf32>
    %141 = vector.broadcast %138 : vector<2x1xf32> to vector<2x512xf32>
    %142 = arith.addf %140, %141 : vector<2x512xf32>
    %c0_24 = arith.constant 0 : index
    %c14 = arith.constant 14 : index
    %143 = vector.load %arg1[%c0_24, %c14] : memref<8x36xf32, #tpu.memory_space<vmem>>, vector<2x2xf32>
    %144 = vector.extract_strided_slice %143 {offsets = [0, 0], sizes = [2, 1], strides = [1, 1]} : vector<2x2xf32> to vector<2x1xf32>
    %145 = vector.extract_strided_slice %54 {offsets = [0, 0], sizes = [1, 512], strides = [1, 1]} : vector<2x512xf32> to vector<1x512xf32>
    %146 = vector.broadcast %144 : vector<2x1xf32> to vector<2x512xf32>
    %147 = vector.broadcast %145 : vector<1x512xf32> to vector<2x512xf32>
    %148 = arith.mulf %146, %147 : vector<2x512xf32>
    %149 = vector.extract_strided_slice %143 {offsets = [0, 1], sizes = [2, 1], strides = [1, 1]} : vector<2x2xf32> to vector<2x1xf32>
    %150 = vector.extract_strided_slice %54 {offsets = [1, 0], sizes = [1, 512], strides = [1, 1]} : vector<2x512xf32> to vector<1x512xf32>
    %151 = vector.broadcast %149 : vector<2x1xf32> to vector<2x512xf32>
    %152 = vector.broadcast %150 : vector<1x512xf32> to vector<2x512xf32>
    %153 = arith.mulf %151, %152 : vector<2x512xf32>
    %154 = arith.addf %148, %153 : vector<2x512xf32>
    %c0_25 = arith.constant 0 : index
    %c16 = arith.constant 16 : index
    %155 = vector.load %arg1[%c0_25, %c16] : memref<8x36xf32, #tpu.memory_space<vmem>>, vector<2x1xf32>
    %156 = vector.broadcast %155 : vector<2x1xf32> to vector<2x512xf32>
    %157 = arith.addf %154, %156 : vector<2x512xf32>
    %cst_26 = arith.constant dense<0.000000e+00> : vector<2xf32>
    %158 = vector.multi_reduction <add>, %157, %cst_26 [1] : vector<2x512xf32> to vector<2xf32>
    %159 = vector.shape_cast %158 : vector<2xf32> to vector<2x1xf32>
    %cst_27 = arith.constant 5.120000e+02 : f32
    %160 = vector.broadcast %cst_27 : f32 to vector<2x1xf32>
    %161 = arith.divf %159, %160 : vector<2x1xf32>
    %162 = arith.mulf %157, %157 : vector<2x512xf32>
    %cst_28 = arith.constant dense<0.000000e+00> : vector<2xf32>
    %163 = vector.multi_reduction <add>, %162, %cst_28 [1] : vector<2x512xf32> to vector<2xf32>
    %164 = vector.shape_cast %163 : vector<2xf32> to vector<2x1xf32>
    %cst_29 = arith.constant 5.120000e+02 : f32
    %165 = vector.broadcast %cst_29 : f32 to vector<2x1xf32>
    %166 = arith.divf %164, %165 : vector<2x1xf32>
    %167 = arith.mulf %161, %161 : vector<2x1xf32>
    %168 = arith.subf %166, %167 : vector<2x1xf32>
    %cst_30 = arith.constant 0.000000e+00 : f32
    %169 = vector.broadcast %cst_30 : f32 to vector<2x1xf32>
    %170 = arith.maximumf %168, %169 : vector<2x1xf32>
    %c0_31 = arith.constant 0 : index
    %c17 = arith.constant 17 : index
    %171 = vector.load %arg1[%c0_31, %c17] : memref<8x36xf32, #tpu.memory_space<vmem>>, vector<2x1xf32>
    %cst_32 = arith.constant 9.99999974E-6 : f32
    %172 = vector.broadcast %cst_32 : f32 to vector<2x1xf32>
    %173 = arith.addf %170, %172 : vector<2x1xf32>
    %174 = math.rsqrt %173 : vector<2x1xf32>
    %175 = arith.mulf %171, %174 : vector<2x1xf32>
    %c0_33 = arith.constant 0 : index
    %c18 = arith.constant 18 : index
    %176 = vector.load %arg1[%c0_33, %c18] : memref<8x36xf32, #tpu.memory_space<vmem>>, vector<2x1xf32>
    %177 = arith.mulf %161, %175 : vector<2x1xf32>
    %178 = arith.subf %176, %177 : vector<2x1xf32>
    %179 = vector.broadcast %175 : vector<2x1xf32> to vector<2x512xf32>
    %180 = arith.mulf %157, %179 : vector<2x512xf32>
    %181 = vector.broadcast %178 : vector<2x1xf32> to vector<2x512xf32>
    %182 = arith.addf %180, %181 : vector<2x512xf32>
    %cst_34 = arith.constant 0.000000e+00 : f32
    %183 = vector.broadcast %cst_34 : f32 to vector<2x512xf32>
    %184 = arith.subf %183, %182 : vector<2x512xf32>
    %185 = math.exp %184 : vector<2x512xf32>
    %cst_35 = arith.constant 1.000000e+00 : f32
    %186 = vector.broadcast %cst_35 : f32 to vector<2x512xf32>
    %187 = arith.addf %186, %185 : vector<2x512xf32>
    %188 = tpu.reciprocal %187 {approx = true} : vector<2x512xf32> -> vector<2x512xf32>
    %189 = arith.mulf %182, %188 : vector<2x512xf32>
    %c0_36 = arith.constant 0 : index
    %c19 = arith.constant 19 : index
    %190 = vector.load %arg1[%c0_36, %c19] : memref<8x36xf32, #tpu.memory_space<vmem>>, vector<2x9xf32>
    %191 = vector.extract_strided_slice %190 {offsets = [0, 4], sizes = [2, 1], strides = [1, 1]} : vector<2x9xf32> to vector<2x1xf32>
    %192 = vector.broadcast %191 : vector<2x1xf32> to vector<2x512xf32>
    %193 = arith.mulf %189, %192 : vector<2x512xf32>
    %c17_i32_37 = arith.constant 17 : i32
    %194 = tpu.dynamic_rotate %189 by %c17_i32_37 dim 1 : vector<2x512xf32>, i32 -> vector<2x512xf32>
    %195 = vector.broadcast %49 : vector<1x512xf32> to vector<2x512xf32>
    %196 = arith.mulf %194, %195 : vector<2x512xf32>
    %197 = vector.extract_strided_slice %190 {offsets = [0, 0], sizes = [2, 1], strides = [1, 1]} : vector<2x9xf32> to vector<2x1xf32>
    %198 = vector.broadcast %197 : vector<2x1xf32> to vector<2x512xf32>
    %199 = arith.mulf %196, %198 : vector<2x512xf32>
    %200 = arith.addf %193, %199 : vector<2x512xf32>
    %c16_i32_38 = arith.constant 16 : i32
    %201 = tpu.dynamic_rotate %189 by %c16_i32_38 dim 1 : vector<2x512xf32>, i32 -> vector<2x512xf32>
    %202 = vector.broadcast %36 : vector<1x512xf32> to vector<2x512xf32>
    %203 = arith.mulf %201, %202 : vector<2x512xf32>
    %204 = vector.extract_strided_slice %190 {offsets = [0, 1], sizes = [2, 1], strides = [1, 1]} : vector<2x9xf32> to vector<2x1xf32>
    %205 = vector.broadcast %204 : vector<2x1xf32> to vector<2x512xf32>
    %206 = arith.mulf %203, %205 : vector<2x512xf32>
    %207 = arith.addf %200, %206 : vector<2x512xf32>
    %c15_i32_39 = arith.constant 15 : i32
    %208 = tpu.dynamic_rotate %189 by %c15_i32_39 dim 1 : vector<2x512xf32>, i32 -> vector<2x512xf32>
    %209 = vector.broadcast %50 : vector<1x512xf32> to vector<2x512xf32>
    %210 = arith.mulf %208, %209 : vector<2x512xf32>
    %211 = vector.extract_strided_slice %190 {offsets = [0, 2], sizes = [2, 1], strides = [1, 1]} : vector<2x9xf32> to vector<2x1xf32>
    %212 = vector.broadcast %211 : vector<2x1xf32> to vector<2x512xf32>
    %213 = arith.mulf %210, %212 : vector<2x512xf32>
    %214 = arith.addf %207, %213 : vector<2x512xf32>
    %c1_i32_40 = arith.constant 1 : i32
    %215 = tpu.dynamic_rotate %189 by %c1_i32_40 dim 1 : vector<2x512xf32>, i32 -> vector<2x512xf32>
    %216 = vector.broadcast %44 : vector<1x512xf32> to vector<2x512xf32>
    %217 = arith.mulf %215, %216 : vector<2x512xf32>
    %218 = vector.extract_strided_slice %190 {offsets = [0, 3], sizes = [2, 1], strides = [1, 1]} : vector<2x9xf32> to vector<2x1xf32>
    %219 = vector.broadcast %218 : vector<2x1xf32> to vector<2x512xf32>
    %220 = arith.mulf %217, %219 : vector<2x512xf32>
    %221 = arith.addf %214, %220 : vector<2x512xf32>
    %c511_i32_41 = arith.constant 511 : i32
    %222 = tpu.dynamic_rotate %189 by %c511_i32_41 dim 1 : vector<2x512xf32>, i32 -> vector<2x512xf32>
    %223 = vector.broadcast %48 : vector<1x512xf32> to vector<2x512xf32>
    %224 = arith.mulf %222, %223 : vector<2x512xf32>
    %225 = vector.extract_strided_slice %190 {offsets = [0, 5], sizes = [2, 1], strides = [1, 1]} : vector<2x9xf32> to vector<2x1xf32>
    %226 = vector.broadcast %225 : vector<2x1xf32> to vector<2x512xf32>
    %227 = arith.mulf %224, %226 : vector<2x512xf32>
    %228 = arith.addf %221, %227 : vector<2x512xf32>
    %c497_i32_42 = arith.constant 497 : i32
    %229 = tpu.dynamic_rotate %189 by %c497_i32_42 dim 1 : vector<2x512xf32>, i32 -> vector<2x512xf32>
    %230 = vector.broadcast %51 : vector<1x512xf32> to vector<2x512xf32>
    %231 = arith.mulf %229, %230 : vector<2x512xf32>
    %232 = vector.extract_strided_slice %190 {offsets = [0, 6], sizes = [2, 1], strides = [1, 1]} : vector<2x9xf32> to vector<2x1xf32>
    %233 = vector.broadcast %232 : vector<2x1xf32> to vector<2x512xf32>
    %234 = arith.mulf %231, %233 : vector<2x512xf32>
    %235 = arith.addf %228, %234 : vector<2x512xf32>
    %c496_i32_43 = arith.constant 496 : i32
    %236 = tpu.dynamic_rotate %189 by %c496_i32_43 dim 1 : vector<2x512xf32>, i32 -> vector<2x512xf32>
    %237 = vector.broadcast %40 : vector<1x512xf32> to vector<2x512xf32>
    %238 = arith.mulf %236, %237 : vector<2x512xf32>
    %239 = vector.extract_strided_slice %190 {offsets = [0, 7], sizes = [2, 1], strides = [1, 1]} : vector<2x9xf32> to vector<2x1xf32>
    %240 = vector.broadcast %239 : vector<2x1xf32> to vector<2x512xf32>
    %241 = arith.mulf %238, %240 : vector<2x512xf32>
    %242 = arith.addf %235, %241 : vector<2x512xf32>
    %c495_i32_44 = arith.constant 495 : i32
    %243 = tpu.dynamic_rotate %189 by %c495_i32_44 dim 1 : vector<2x512xf32>, i32 -> vector<2x512xf32>
    %244 = vector.broadcast %52 : vector<1x512xf32> to vector<2x512xf32>
    %245 = arith.mulf %243, %244 : vector<2x512xf32>
    %246 = vector.extract_strided_slice %190 {offsets = [0, 8], sizes = [2, 1], strides = [1, 1]} : vector<2x9xf32> to vector<2x1xf32>
    %247 = vector.broadcast %246 : vector<2x1xf32> to vector<2x512xf32>
    %248 = arith.mulf %245, %247 : vector<2x512xf32>
    %249 = arith.addf %242, %248 : vector<2x512xf32>
    %c0_45 = arith.constant 0 : index
    %c28 = arith.constant 28 : index
    %250 = vector.load %arg1[%c0_45, %c28] : memref<8x36xf32, #tpu.memory_space<vmem>>, vector<2x1xf32>
    %251 = vector.broadcast %250 : vector<2x1xf32> to vector<2x512xf32>
    %252 = arith.addf %249, %251 : vector<2x512xf32>
    %cst_46 = arith.constant dense<0.000000e+00> : vector<2xf32>
    %253 = vector.multi_reduction <add>, %252, %cst_46 [1] : vector<2x512xf32> to vector<2xf32>
    %254 = vector.shape_cast %253 : vector<2xf32> to vector<2x1xf32>
    %cst_47 = arith.constant 5.120000e+02 : f32
    %255 = vector.broadcast %cst_47 : f32 to vector<2x1xf32>
    %256 = arith.divf %254, %255 : vector<2x1xf32>
    %257 = arith.mulf %252, %252 : vector<2x512xf32>
    %cst_48 = arith.constant dense<0.000000e+00> : vector<2xf32>
    %258 = vector.multi_reduction <add>, %257, %cst_48 [1] : vector<2x512xf32> to vector<2xf32>
    %259 = vector.shape_cast %258 : vector<2xf32> to vector<2x1xf32>
    %cst_49 = arith.constant 5.120000e+02 : f32
    %260 = vector.broadcast %cst_49 : f32 to vector<2x1xf32>
    %261 = arith.divf %259, %260 : vector<2x1xf32>
    %262 = arith.mulf %256, %256 : vector<2x1xf32>
    %263 = arith.subf %261, %262 : vector<2x1xf32>
    %cst_50 = arith.constant 0.000000e+00 : f32
    %264 = vector.broadcast %cst_50 : f32 to vector<2x1xf32>
    %265 = arith.maximumf %263, %264 : vector<2x1xf32>
    %c0_51 = arith.constant 0 : index
    %c29 = arith.constant 29 : index
    %266 = vector.load %arg1[%c0_51, %c29] : memref<8x36xf32, #tpu.memory_space<vmem>>, vector<2x1xf32>
    %cst_52 = arith.constant 9.99999974E-6 : f32
    %267 = vector.broadcast %cst_52 : f32 to vector<2x1xf32>
    %268 = arith.addf %265, %267 : vector<2x1xf32>
    %269 = math.rsqrt %268 : vector<2x1xf32>
    %270 = arith.mulf %266, %269 : vector<2x1xf32>
    %c0_53 = arith.constant 0 : index
    %c30 = arith.constant 30 : index
    %271 = vector.load %arg1[%c0_53, %c30] : memref<8x36xf32, #tpu.memory_space<vmem>>, vector<2x1xf32>
    %272 = arith.mulf %256, %270 : vector<2x1xf32>
    %273 = arith.subf %271, %272 : vector<2x1xf32>
    %274 = vector.broadcast %270 : vector<2x1xf32> to vector<2x512xf32>
    %275 = arith.mulf %274, %252 : vector<2x512xf32>
    %276 = vector.broadcast %273 : vector<2x1xf32> to vector<2x512xf32>
    %277 = arith.addf %275, %276 : vector<2x512xf32>
    %c0_54 = arith.constant 0 : index
    %c12 = arith.constant 12 : index
    %278 = vector.load %arg1[%c0_54, %c12] : memref<8x36xf32, #tpu.memory_space<vmem>>, vector<8x2xf32>
    %c0_55 = arith.constant 0 : index
    %c31 = arith.constant 31 : index
    %279 = vector.load %arg1[%c0_55, %c31] : memref<8x36xf32, #tpu.memory_space<vmem>>, vector<8x2xf32>
    %280 = vector.extract_strided_slice %278 {offsets = [0, 0], sizes = [8, 1], strides = [1, 1]} : vector<8x2xf32> to vector<8x1xf32>
    %281 = vector.extract_strided_slice %142 {offsets = [0, 0], sizes = [1, 512], strides = [1, 1]} : vector<2x512xf32> to vector<1x512xf32>
    %282 = vector.broadcast %280 : vector<8x1xf32> to vector<8x512xf32>
    %283 = vector.broadcast %281 : vector<1x512xf32> to vector<8x512xf32>
    %284 = arith.mulf %282, %283 : vector<8x512xf32>
    %285 = vector.extract_strided_slice %279 {offsets = [0, 0], sizes = [8, 1], strides = [1, 1]} : vector<8x2xf32> to vector<8x1xf32>
    %286 = vector.extract_strided_slice %277 {offsets = [0, 0], sizes = [1, 512], strides = [1, 1]} : vector<2x512xf32> to vector<1x512xf32>
    %287 = vector.broadcast %285 : vector<8x1xf32> to vector<8x512xf32>
    %288 = vector.broadcast %286 : vector<1x512xf32> to vector<8x512xf32>
    %289 = arith.mulf %287, %288 : vector<8x512xf32>
    %290 = arith.addf %284, %289 : vector<8x512xf32>
    %291 = vector.extract_strided_slice %278 {offsets = [0, 1], sizes = [8, 1], strides = [1, 1]} : vector<8x2xf32> to vector<8x1xf32>
    %292 = vector.extract_strided_slice %142 {offsets = [1, 0], sizes = [1, 512], strides = [1, 1]} : vector<2x512xf32> to vector<1x512xf32>
    %293 = vector.broadcast %291 : vector<8x1xf32> to vector<8x512xf32>
    %294 = vector.broadcast %292 : vector<1x512xf32> to vector<8x512xf32>
    %295 = arith.mulf %293, %294 : vector<8x512xf32>
    %296 = vector.extract_strided_slice %279 {offsets = [0, 1], sizes = [8, 1], strides = [1, 1]} : vector<8x2xf32> to vector<8x1xf32>
    %297 = vector.extract_strided_slice %277 {offsets = [1, 0], sizes = [1, 512], strides = [1, 1]} : vector<2x512xf32> to vector<1x512xf32>
    %298 = vector.broadcast %296 : vector<8x1xf32> to vector<8x512xf32>
    %299 = vector.broadcast %297 : vector<1x512xf32> to vector<8x512xf32>
    %300 = arith.mulf %298, %299 : vector<8x512xf32>
    %301 = arith.addf %295, %300 : vector<8x512xf32>
    %302 = arith.addf %290, %301 : vector<8x512xf32>
    %c0_56 = arith.constant 0 : index
    %c33 = arith.constant 33 : index
    %303 = vector.load %arg1[%c0_56, %c33] : memref<8x36xf32, #tpu.memory_space<vmem>>, vector<8x1xf32>
    %304 = vector.broadcast %303 : vector<8x1xf32> to vector<8x512xf32>
    %305 = arith.addf %302, %304 : vector<8x512xf32>
    %cst_57 = arith.constant dense<0.000000e+00> : vector<8xf32>
    %306 = vector.multi_reduction <add>, %305, %cst_57 [1] : vector<8x512xf32> to vector<8xf32>
    %307 = vector.shape_cast %306 : vector<8xf32> to vector<8x1xf32>
    %cst_58 = arith.constant 5.120000e+02 : f32
    %308 = vector.broadcast %cst_58 : f32 to vector<8x1xf32>
    %309 = arith.divf %307, %308 : vector<8x1xf32>
    %310 = arith.mulf %305, %305 : vector<8x512xf32>
    %cst_59 = arith.constant dense<0.000000e+00> : vector<8xf32>
    %311 = vector.multi_reduction <add>, %310, %cst_59 [1] : vector<8x512xf32> to vector<8xf32>
    %312 = vector.shape_cast %311 : vector<8xf32> to vector<8x1xf32>
    %cst_60 = arith.constant 5.120000e+02 : f32
    %313 = vector.broadcast %cst_60 : f32 to vector<8x1xf32>
    %314 = arith.divf %312, %313 : vector<8x1xf32>
    %315 = arith.mulf %309, %309 : vector<8x1xf32>
    %316 = arith.subf %314, %315 : vector<8x1xf32>
    %cst_61 = arith.constant 0.000000e+00 : f32
    %317 = vector.broadcast %cst_61 : f32 to vector<8x1xf32>
    %318 = arith.maximumf %316, %317 : vector<8x1xf32>
    %c0_62 = arith.constant 0 : index
    %c34 = arith.constant 34 : index
    %319 = vector.load %arg1[%c0_62, %c34] : memref<8x36xf32, #tpu.memory_space<vmem>>, vector<8x1xf32>
    %cst_63 = arith.constant 9.99999974E-6 : f32
    %320 = vector.broadcast %cst_63 : f32 to vector<8x1xf32>
    %321 = arith.addf %318, %320 : vector<8x1xf32>
    %322 = math.rsqrt %321 : vector<8x1xf32>
    %323 = arith.mulf %319, %322 : vector<8x1xf32>
    %c0_64 = arith.constant 0 : index
    %c35 = arith.constant 35 : index
    %324 = vector.load %arg1[%c0_64, %c35] : memref<8x36xf32, #tpu.memory_space<vmem>>, vector<8x1xf32>
    %325 = arith.mulf %309, %323 : vector<8x1xf32>
    %326 = arith.subf %324, %325 : vector<8x1xf32>
    %327 = vector.broadcast %323 : vector<8x1xf32> to vector<8x512xf32>
    %328 = arith.mulf %305, %327 : vector<8x512xf32>
    %329 = vector.broadcast %326 : vector<8x1xf32> to vector<8x512xf32>
    %330 = arith.addf %328, %329 : vector<8x512xf32>
    %cst_65 = arith.constant 0.000000e+00 : f32
    %331 = vector.broadcast %cst_65 : f32 to vector<8x512xf32>
    %332 = arith.subf %331, %330 : vector<8x512xf32>
    %333 = math.exp %332 : vector<8x512xf32>
    %cst_66 = arith.constant 1.000000e+00 : f32
    %334 = vector.broadcast %cst_66 : f32 to vector<8x512xf32>
    %335 = arith.addf %334, %333 : vector<8x512xf32>
    %336 = tpu.reciprocal %335 : vector<8x512xf32> -> vector<8x512xf32>
    %337 = arith.mulf %330, %336 : vector<8x512xf32>
    %c0_67 = arith.constant 0 : index
    %c0_68 = arith.constant 0 : index
    %338 = vector.load %arg2[%c0_67, %c0_68] : memref<8x512xf32, #tpu.memory_space<vmem>>, vector<8x512xf32>
    tpu.vector_store %arg2[%c0_67, %c0_68], %337 {strides = array<i32>} : memref<8x512xf32, #tpu.memory_space<vmem>>, vector<8x512xf32>,
    return
  }
}

</mosaic_0001>

<llo_original>
// kernel: residual_bottleneck.1
$region0: #{residual_bottleneck.1}
  #allocation0 [shape = 'u32[]', space=smem, size = 0x4, offset = 0x4, fixed_abs, tag = 'smem constant byte address 0x4 - core index']
  #allocation1 [shape = 'u32[72,128]{1,0:T(1,128)}', space=vmem, size = 0x9000, scoped, tag = 'internal scratch']
  %s0 = inlined_call_operand.vmem [shape: f32[4,512], index: 0, kind: input, shape index: {}]
  %s1 = inlined_call_operand.vmem [shape: f32[8,36], index: 1, kind: input, shape index: {}]
  %s2 = inlined_call_operand.vmem [shape: f32[8,512], index: 2, kind: output, shape index: {}]
  %s3 = sld [smem:[#allocation0]]
  $region18: #{residual_bottleneck.1} parent=0
    _
  %s5 = ssub.s32 1, %s3
  %s6 = scalar_select 0, %s5, %s3
  // Predicated region
  $region2: #{residual_bottleneck.1} parent=0 // pred_check
    _
  $region3: #{residual_bottleneck.1} parent=0 // pred_check_branch
    %8 = sbr.rel (0) target = $region5
  $region4: #{residual_bottleneck.1} parent=0 // pred_region
    _
  $region5: #{residual_bottleneck.1} parent=0 // pred_fallthru
    _
  // Predicated region
  $region6: #{residual_bottleneck.1} parent=0 // pred_check
    _
  $region7: #{residual_bottleneck.1} parent=0 // pred_check_branch
    %10 = sbr.rel (0) target = $region9
  $region8: #{residual_bottleneck.1} parent=0 // pred_region
    _
  $region9: #{residual_bottleneck.1} parent=0 // pred_fallthru
    _
  %v11 = vlaneseq
  %v12 = vand.u32 %v11, 127
  %v13 = vadd.s32 %v12, 128
  %v14 = vadd.s32 %v12, 256
  %v15 = vadd.s32 %v12, 384
  %vm16 = vcmp.lt.s32.totalorder %v12, 0
  %v17 = vsub.s32 0, %v12
  %v18 = vsel %vm16, %v17, %v12
  %v19 = vshrl.u32 %v18, 8
  %v20 = vand.u32 %v18, 255
  %v21 = vsub.s32 0, %v20
  %v22 = vsel %vm16, %v21, %v20
  %vm23 = vcmp.lt.s32.totalorder %v13, 0
  %v24 = vsub.s32 0, %v13
  %v25 = vsel %vm23, %v24, %v13
  %v26 = vshrl.u32 %v25, 8
  %v27 = vand.u32 %v25, 255
  %v28 = vsub.s32 0, %v27
  %v29 = vsel %vm23, %v28, %v27
  %vm30 = vcmp.lt.s32.totalorder %v14, 0
  %v31 = vsub.s32 0, %v14
  %v32 = vsel %vm30, %v31, %v14
  %v33 = vshrl.u32 %v32, 8
  %v34 = vand.u32 %v32, 255
  %v35 = vsub.s32 0, %v34
  %v36 = vsel %vm30, %v35, %v34
  %vm37 = vcmp.lt.s32.totalorder %v15, 0
  %v38 = vsub.s32 0, %v15
  %v39 = vsel %vm37, %v38, %v15
  %v40 = vshrl.u32 %v39, 8
  %v41 = vand.u32 %v39, 255
  %v42 = vsub.s32 0, %v41
  %v43 = vsel %vm37, %v42, %v41
  %vm44 = vcmp.ne.s32.totalorder %v22, 0
  %vm45 = vcmp.ne.s32.totalorder %v29, 0
  %vm46 = vcmp.ne.s32.totalorder %v36, 0
  %vm47 = vcmp.ne.s32.totalorder %v43, 0
  %vm48 = vcmp.lt.s32.totalorder %v22, 0
  %vm49 = vcmp.lt.s32.totalorder %v29, 0
  %vm50 = vcmp.lt.s32.totalorder %v36, 0
  %vm51 = vcmp.lt.s32.totalorder %v43, 0
  %vm52 = vmand %vm48, %vm44
  %vm53 = vmand %vm49, %vm45
  %vm54 = vmand %vm50, %vm46
  %vm55 = vmand %vm51, %vm47
  %v56 = vadd.s32 %v22, 256
  %v57 = vadd.s32 %v29, 256
  %v58 = vadd.s32 %v36, 256
  %v59 = vadd.s32 %v43, 256
  %v60 = vsel %vm52, %v56, %v22
  %v61 = vsel %vm53, %v57, %v29
  %v62 = vsel %vm54, %v58, %v36
  %v63 = vsel %vm55, %v59, %v43
  %vm64 = vcmp.lt.s32.totalorder %v12, 0
  %v65 = vsub.s32 0, %v12
  %v66 = vsel %vm64, %v65, %v12
  %v67 = vshrl.u32 %v66, 4
  %v68 = vand.u32 %v66, 15
  %v69 = vsub.s32 0, %v68
  %v70 = vsel %vm64, %v69, %v68
  %vm71 = vcmp.lt.s32.totalorder %v13, 0
  %v72 = vsub.s32 0, %v13
  %v73 = vsel %vm71, %v72, %v13
  %v74 = vshrl.u32 %v73, 4
  %v75 = vand.u32 %v73, 15
  %v76 = vsub.s32 0, %v75
  %v77 = vsel %vm71, %v76, %v75
  %vm78 = vcmp.lt.s32.totalorder %v14, 0
  %v79 = vsub.s32 0, %v14
  %v80 = vsel %vm78, %v79, %v14
  %v81 = vshrl.u32 %v80, 4
  %v82 = vand.u32 %v80, 15
  %v83 = vsub.s32 0, %v82
  %v84 = vsel %vm78, %v83, %v82
  %vm85 = vcmp.lt.s32.totalorder %v15, 0
  %v86 = vsub.s32 0, %v15
  %v87 = vsel %vm85, %v86, %v15
  %v88 = vshrl.u32 %v87, 4
  %v89 = vand.u32 %v87, 15
  %v90 = vsub.s32 0, %v89
  %v91 = vsel %vm85, %v90, %v89
  %vm92 = vcmp.ne.s32.totalorder %v70, 0
  %vm93 = vcmp.ne.s32.totalorder %v77, 0
  %vm94 = vcmp.ne.s32.totalorder %v84, 0
  %vm95 = vcmp.ne.s32.totalorder %v91, 0
  %vm96 = vcmp.lt.s32.totalorder %v70, 0
  %vm97 = vcmp.lt.s32.totalorder %v77, 0
  %vm98 = vcmp.lt.s32.totalorder %v84, 0
  %vm99 = vcmp.lt.s32.totalorder %v91, 0
  %vm100 = vmand %vm96, %vm92
  %vm101 = vmand %vm97, %vm93
  %vm102 = vmand %vm98, %vm94
  %vm103 = vmand %vm99, %vm95
  %v104 = vadd.s32 %v70, 16
  %v105 = vadd.s32 %v77, 16
  %v106 = vadd.s32 %v84, 16
  %v107 = vadd.s32 %v91, 16
  %v108 = vsel %vm100, %v104, %v70
  %v109 = vsel %vm101, %v105, %v77
  %v110 = vsel %vm102, %v106, %v84
  %v111 = vsel %vm103, %v107, %v91
  %vm112 = vcmp.ge.s32.totalorder %v60, 16
  %vm113 = vcmp.ge.s32.totalorder %v61, 16
  %vm114 = vcmp.ge.s32.totalorder %v62, 16
  %vm115 = vcmp.ge.s32.totalorder %v63, 16
  %v116 = vsel %vm112, 1, 0
  %v117 = vsel %vm113, 1, 0
  %v118 = vsel %vm114, 1, 0
  %v119 = vsel %vm115, 1, 0
  %v120 = vcvt.s32.f32 %v116
  %v121 = vcvt.s32.f32 %v117
  %v122 = vcvt.s32.f32 %v118
  %v123 = vcvt.s32.f32 %v119
  %vm124 = vcmp.lt.s32.totalorder %v60, 240
  %vm125 = vcmp.lt.s32.totalorder %v61, 240
  %vm126 = vcmp.lt.s32.totalorder %v62, 240
  %vm127 = vcmp.lt.s32.totalorder %v63, 240
  %v128 = vsel %vm124, 1, 0
  %v129 = vsel %vm125, 1, 0
  %v130 = vsel %vm126, 1, 0
  %v131 = vsel %vm127, 1, 0
  %v132 = vcvt.s32.f32 %v128
  %v133 = vcvt.s32.f32 %v129
  %v134 = vcvt.s32.f32 %v130
  %v135 = vcvt.s32.f32 %v131
  %vm136 = vcmp.ge.s32.totalorder %v108, 1
  %vm137 = vcmp.ge.s32.totalorder %v109, 1
  %vm138 = vcmp.ge.s32.totalorder %v110, 1
  %vm139 = vcmp.ge.s32.totalorder %v111, 1
  %v140 = vsel %vm136, 1, 0
  %v141 = vsel %vm137, 1, 0
  %v142 = vsel %vm138, 1, 0
  %v143 = vsel %vm139, 1, 0
  %v144 = vcvt.s32.f32 %v140
  %v145 = vcvt.s32.f32 %v141
  %v146 = vcvt.s32.f32 %v142
  %v147 = vcvt.s32.f32 %v143
  %vm148 = vcmp.le.s32.totalorder %v108, 14
  %vm149 = vcmp.le.s32.totalorder %v109, 14
  %vm150 = vcmp.le.s32.totalorder %v110, 14
  %vm151 = vcmp.le.s32.totalorder %v111, 14
  %v152 = vsel %vm148, 1, 0
  %v153 = vsel %vm149, 1, 0
  %v154 = vsel %vm150, 1, 0
  %v155 = vsel %vm151, 1, 0
  %v156 = vcvt.s32.f32 %v152
  %v157 = vcvt.s32.f32 %v153
  %v158 = vcvt.s32.f32 %v154
  %v159 = vcvt.s32.f32 %v155
  %v160 = vmul.f32 %v120, %v144
  %v161 = vmul.f32 %v121, %v145
  %v162 = vmul.f32 %v122, %v146
  %v163 = vmul.f32 %v123, %v147
  %v164 = vmul.f32 %v120, %v156
  %v165 = vmul.f32 %v121, %v157
  %v166 = vmul.f32 %v122, %v158
  %v167 = vmul.f32 %v123, %v159
  %v168 = vmul.f32 %v132, %v144
  %v169 = vmul.f32 %v133, %v145
  %v170 = vmul.f32 %v134, %v146
  %v171 = vmul.f32 %v135, %v147
  %v172 = vmul.f32 %v132, %v156
  %v173 = vmul.f32 %v133, %v157
  %v174 = vmul.f32 %v134, %v158
  %v175 = vmul.f32 %v135, %v159
  %v176 = vld [vmem:[%s0] sm:$0x33]
  %v177 = vld [vmem:[%s0 + $0x8] sm:$0x33]
  %v178 = vld [vmem:[%s0] sm:$0xcc]
  %v179 = vld [vmem:[%s0 + $0x8] sm:$0xcc]
  %v180 = vld [vmem:[%s1] sm:$0x3]
  %182 = vset.pattern.permute.xlu0 4
  %183 = vperm.xlu0 %182, %v180
  %v184 = vpop.permute.xlu0 %183
  %v186 = vunpack.c.l.s4 839922192
  %v187 = vunpack.c.0.s8 %v186
  %v188 = vperm.slane %v184, %v187
  %v190 = vmul.f32 %v176, %v188
  %v191 = vmul.f32 %v177, %v188
  %194 = vst [vmem:[#allocation1] ss:$2 sm:$0xff] %v176
  %s195 = scalar_lea.vmem [#allocation1], 16
  %196 = vst [vmem:[%s195] ss:$2 sm:$0xff] %v177
  %v197 = vld.sshfl [vmem:[#allocation1] sm:$0xff pattern:$0x75316420]
  %v198 = vld.sshfl [vmem:[#allocation1 + $0x8] sm:$0xff pattern:$0x75316420]
  %v199 = vld.sshfl [vmem:[#allocation1 + $0x10] sm:$0xff pattern:$0x75316420]
  %v200 = vld.sshfl [vmem:[#allocation1 + $0x18] sm:$0xff pattern:$0x75316420]
  %205 = vrot.lane.b32.xlu0 %v197, 17
  %v206 = vpop.permute.xlu0 %205
  %207 = vrot.lane.b32.xlu0 %v198, 17
  %v208 = vpop.permute.xlu0 %207
  %209 = vrot.lane.b32.xlu0 %v199, 17
  %v210 = vpop.permute.xlu0 %209
  %211 = vrot.lane.b32.xlu0 %v200, 17
  %v212 = vpop.permute.xlu0 %211
  %vm213 = vcmp.lt.s32.totalorder %v12, 17
  %v214 = vsel %vm213, %v210, %v212
  %v215 = vsel %vm213, %v208, %v210
  %v216 = vsel %vm213, %v206, %v208
  %v217 = vsel %vm213, %v212, %v206
  %v218 = vmul.f32 %v217, %v160
  %v219 = vmul.f32 %v216, %v161
  %v220 = vmul.f32 %v215, %v162
  %v221 = vmul.f32 %v214, %v163
  %222 = vset.pattern.permute.xlu0 0
  %223 = vperm.xlu0 %222, %v180
  %v224 = vpop.permute.xlu0 %223
  %v226 = vmul.f32 %v218, %v224
  %v227 = vmul.f32 %v219, %v224
  %v228 = vmul.f32 %v220, %v224
  %v229 = vmul.f32 %v221, %v224
  %v234 = vrot.slane %v227, 4
  %v235 = vrot.slane %v229, 4
  %vm236 = vcmask 1043456
  %v237 = vsel %vm236, %v226, %v234
  %v238 = vsel %vm236, %v228, %v235
  %v241 = vadd.f32 %v190, %v237
  %v242 = vadd.f32 %v191, %v238
  %243 = vst [vmem:[#allocation1] ss:$2 sm:$0xff] %v176
  %s244 = scalar_lea.vmem [#allocation1], 16
  %245 = vst [vmem:[%s244] ss:$2 sm:$0xff] %v177
  %v246 = vld.sshfl [vmem:[#allocation1] sm:$0xff pattern:$0x75316420]
  %v247 = vld.sshfl [vmem:[#allocation1 + $0x8] sm:$0xff pattern:$0x75316420]
  %v248 = vld.sshfl [vmem:[#allocation1 + $0x10] sm:$0xff pattern:$0x75316420]
  %v249 = vld.sshfl [vmem:[#allocation1 + $0x18] sm:$0xff pattern:$0x75316420]
  %254 = vrot.lane.b32.xlu0 %v246, 16
  %v255 = vpop.permute.xlu0 %254
  %256 = vrot.lane.b32.xlu0 %v247, 16
  %v257 = vpop.permute.xlu0 %256
  %258 = vrot.lane.b32.xlu0 %v248, 16
  %v259 = vpop.permute.xlu0 %258
  %260 = vrot.lane.b32.xlu0 %v249, 16
  %v261 = vpop.permute.xlu0 %260
  %vm262 = vcmp.lt.s32.totalorder %v12, 16
  %v263 = vsel %vm262, %v259, %v261
  %v264 = vsel %vm262, %v257, %v259
  %v265 = vsel %vm262, %v255, %v257
  %v266 = vsel %vm262, %v261, %v255
  %v267 = vmul.f32 %v266, %v120
  %v268 = vmul.f32 %v265, %v121
  %v269 = vmul.f32 %v264, %v122
  %v270 = vmul.f32 %v263, %v123
  %271 = vset.pattern.permute.xlu0 1
  %272 = vperm.xlu0 %271, %v180
  %v273 = vpop.permute.xlu0 %272
  %v275 = vmul.f32 %v267, %v273
  %v276 = vmul.f32 %v268, %v273
  %v277 = vmul.f32 %v269, %v273
  %v278 = vmul.f32 %v270, %v273
  %v283 = vrot.slane %v276, 4
  %v284 = vrot.slane %v278, 4
  %v285 = vsel %vm236, %v275, %v283
  %v286 = vsel %vm236, %v277, %v284
  %v289 = vadd.f32 %v241, %v285
  %v290 = vadd.f32 %v242, %v286
  %291 = vst [vmem:[#allocation1] ss:$2 sm:$0xff] %v176
  %s292 = scalar_lea.vmem [#allocation1], 16
  %293 = vst [vmem:[%s292] ss:$2 sm:$0xff] %v177
  %v294 = vld.sshfl [vmem:[#allocation1] sm:$0xff pattern:$0x75316420]
  %v295 = vld.sshfl [vmem:[#allocation1 + $0x8] sm:$0xff pattern:$0x75316420]
  %v296 = vld.sshfl [vmem:[#allocation1 + $0x10] sm:$0xff pattern:$0x75316420]
  %v297 = vld.sshfl [vmem:[#allocation1 + $0x18] sm:$0xff pattern:$0x75316420]
  %302 = vrot.lane.b32.xlu0 %v294, 15
  %v303 = vpop.permute.xlu0 %302
  %304 = vrot.lane.b32.xlu0 %v295, 15
  %v305 = vpop.permute.xlu0 %304
  %306 = vrot.lane.b32.xlu0 %v296, 15
  %v307 = vpop.permute.xlu0 %306
  %308 = vrot.lane.b32.xlu0 %v297, 15
  %v309 = vpop.permute.xlu0 %308
  %vm310 = vcmp.lt.s32.totalorder %v12, 15
  %v311 = vsel %vm310, %v307, %v309
  %v312 = vsel %vm310, %v305, %v307
  %v313 = vsel %vm310, %v303, %v305
  %v314 = vsel %vm310, %v309, %v303
  %v315 = vmul.f32 %v314, %v164
  %v316 = vmul.f32 %v313, %v165
  %v317 = vmul.f32 %v312, %v166
  %v318 = vmul.f32 %v311, %v167
  %319 = vset.pattern.permute.xlu0 2
  %320 = vperm.xlu0 %319, %v180
  %v321 = vpop.permute.xlu0 %320
  %v323 = vmul.f32 %v315, %v321
  %v324 = vmul.f32 %v316, %v321
  %v325 = vmul.f32 %v317, %v321
  %v326 = vmul.f32 %v318, %v321
  %v331 = vrot.slane %v324, 4
  %v332 = vrot.slane %v326, 4
  %v333 = vsel %vm236, %v323, %v331
  %v334 = vsel %vm236, %v325, %v332
  %v337 = vadd.f32 %v289, %v333
  %v338 = vadd.f32 %v290, %v334
  %339 = vst [vmem:[#allocation1] ss:$2 sm:$0xff] %v176
  %s340 = scalar_lea.vmem [#allocation1], 16
  %341 = vst [vmem:[%s340] ss:$2 sm:$0xff] %v177
  %v342 = vld.sshfl [vmem:[#allocation1] sm:$0xff pattern:$0x75316420]
  %v343 = vld.sshfl [vmem:[#allocation1 + $0x8] sm:$0xff pattern:$0x75316420]
  %v344 = vld.sshfl [vmem:[#allocation1 + $0x10] sm:$0xff pattern:$0x75316420]
  %v345 = vld.sshfl [vmem:[#allocation1 + $0x18] sm:$0xff pattern:$0x75316420]
  %350 = vrot.lane.b32.xlu0 %v342, 1
  %v351 = vpop.permute.xlu0 %350
  %352 = vrot.lane.b32.xlu0 %v343, 1
  %v353 = vpop.permute.xlu0 %352
  %354 = vrot.lane.b32.xlu0 %v344, 1
  %v355 = vpop.permute.xlu0 %354
  %356 = vrot.lane.b32.xlu0 %v345, 1
  %v357 = vpop.permute.xlu0 %356
  %vm358 = vcmp.lt.s32.totalorder %v12, 1
  %v359 = vsel %vm358, %v355, %v357
  %v360 = vsel %vm358, %v353, %v355
  %v361 = vsel %vm358, %v351, %v353
  %v362 = vsel %vm358, %v357, %v351
  %v363 = vmul.f32 %v362, %v144
  %v364 = vmul.f32 %v361, %v145
  %v365 = vmul.f32 %v360, %v146
  %v366 = vmul.f32 %v359, %v147
  %367 = vset.pattern.permute.xlu0 3
  %368 = vperm.xlu0 %367, %v180
  %v369 = vpop.permute.xlu0 %368
  %v371 = vmul.f32 %v363, %v369
  %v372 = vmul.f32 %v364, %v369
  %v373 = vmul.f32 %v365, %v369
  %v374 = vmul.f32 %v366, %v369
  %v379 = vrot.slane %v372, 4
  %v380 = vrot.slane %v374, 4
  %v381 = vsel %vm236, %v371, %v379
  %v382 = vsel %vm236, %v373, %v380
  %v385 = vadd.f32 %v337, %v381
  %v386 = vadd.f32 %v338, %v382
  %387 = vst [vmem:[#allocation1] ss:$2 sm:$0xff] %v176
  %s388 = scalar_lea.vmem [#allocation1], 16
  %389 = vst [vmem:[%s388] ss:$2 sm:$0xff] %v177
  %v390 = vld.sshfl [vmem:[#allocation1] sm:$0xff pattern:$0x75316420]
  %v391 = vld.sshfl [vmem:[#allocation1 + $0x8] sm:$0xff pattern:$0x75316420]
  %v392 = vld.sshfl [vmem:[#allocation1 + $0x10] sm:$0xff pattern:$0x75316420]
  %v393 = vld.sshfl [vmem:[#allocation1 + $0x18] sm:$0xff pattern:$0x75316420]
  %398 = vrot.lane.b32.xlu0 %v390, 127
  %v399 = vpop.permute.xlu0 %398
  %400 = vrot.lane.b32.xlu0 %v391, 127
  %v401 = vpop.permute.xlu0 %400
  %402 = vrot.lane.b32.xlu0 %v392, 127
  %v403 = vpop.permute.xlu0 %402
  %404 = vrot.lane.b32.xlu0 %v393, 127
  %v405 = vpop.permute.xlu0 %404
  %vm406 = vcmp.lt.s32.totalorder %v12, 127
  %v407 = vsel %vm406, %v403, %v405
  %v408 = vsel %vm406, %v401, %v403
  %v409 = vsel %vm406, %v399, %v401
  %v410 = vsel %vm406, %v405, %v399
  %v411 = vmul.f32 %v409, %v156
  %v412 = vmul.f32 %v408, %v157
  %v413 = vmul.f32 %v407, %v158
  %v414 = vmul.f32 %v410, %v159
  %415 = vset.pattern.permute.xlu0 5
  %416 = vperm.xlu0 %415, %v180
  %v417 = vpop.permute.xlu0 %416
  %v419 = vmul.f32 %v411, %v417
  %v420 = vmul.f32 %v412, %v417
  %v421 = vmul.f32 %v413, %v417
  %v422 = vmul.f32 %v414, %v417
  %v427 = vrot.slane %v420, 4
  %v428 = vrot.slane %v422, 4
  %v429 = vsel %vm236, %v419, %v427
  %v430 = vsel %vm236, %v421, %v428
  %v433 = vadd.f32 %v385, %v429
  %v434 = vadd.f32 %v386, %v430
  %435 = vst [vmem:[#allocation1] ss:$2 sm:$0xff] %v176
  %s436 = scalar_lea.vmem [#allocation1], 16
  %437 = vst [vmem:[%s436] ss:$2 sm:$0xff] %v177
  %v438 = vld.sshfl [vmem:[#allocation1] sm:$0xff pattern:$0x75316420]
  %v439 = vld.sshfl [vmem:[#allocation1 + $0x8] sm:$0xff pattern:$0x75316420]
  %v440 = vld.sshfl [vmem:[#allocation1 + $0x10] sm:$0xff pattern:$0x75316420]
  %v441 = vld.sshfl [vmem:[#allocation1 + $0x18] sm:$0xff pattern:$0x75316420]
  %446 = vrot.lane.b32.xlu0 %v438, 113
  %v447 = vpop.permute.xlu0 %446
  %448 = vrot.lane.b32.xlu0 %v439, 113
  %v449 = vpop.permute.xlu0 %448
  %450 = vrot.lane.b32.xlu0 %v440, 113
  %v451 = vpop.permute.xlu0 %450
  %452 = vrot.lane.b32.xlu0 %v441, 113
  %v453 = vpop.permute.xlu0 %452
  %vm454 = vcmp.lt.s32.totalorder %v12, 113
  %v455 = vsel %vm454, %v451, %v453
  %v456 = vsel %vm454, %v449, %v451
  %v457 = vsel %vm454, %v447, %v449
  %v458 = vsel %vm454, %v453, %v447
  %v459 = vmul.f32 %v457, %v168
  %v460 = vmul.f32 %v456, %v169
  %v461 = vmul.f32 %v455, %v170
  %v462 = vmul.f32 %v458, %v171
  %463 = vset.pattern.permute.xlu0 6
  %464 = vperm.xlu0 %463, %v180
  %v465 = vpop.permute.xlu0 %464
  %v467 = vmul.f32 %v459, %v465
  %v468 = vmul.f32 %v460, %v465
  %v469 = vmul.f32 %v461, %v465
  %v470 = vmul.f32 %v462, %v465
  %v475 = vrot.slane %v468, 4
  %v476 = vrot.slane %v470, 4
  %v477 = vsel %vm236, %v467, %v475
  %v478 = vsel %vm236, %v469, %v476
  %v481 = vadd.f32 %v433, %v477
  %v482 = vadd.f32 %v434, %v478
  %483 = vst [vmem:[#allocation1] ss:$2 sm:$0xff] %v176
  %s484 = scalar_lea.vmem [#allocation1], 16
  %485 = vst [vmem:[%s484] ss:$2 sm:$0xff] %v177
  %v486 = vld.sshfl [vmem:[#allocation1] sm:$0xff pattern:$0x75316420]
  %v487 = vld.sshfl [vmem:[#allocation1 + $0x8] sm:$0xff pattern:$0x75316420]
  %v488 = vld.sshfl [vmem:[#allocation1 + $0x10] sm:$0xff pattern:$0x75316420]
  %v489 = vld.sshfl [vmem:[#allocation1 + $0x18] sm:$0xff pattern:$0x75316420]
  %494 = vrot.lane.b32.xlu0 %v486, 112
  %v495 = vpop.permute.xlu0 %494
  %496 = vrot.lane.b32.xlu0 %v487, 112
  %v497 = vpop.permute.xlu0 %496
  %498 = vrot.lane.b32.xlu0 %v488, 112
  %v499 = vpop.permute.xlu0 %498
  %500 = vrot.lane.b32.xlu0 %v489, 112
  %v501 = vpop.permute.xlu0 %500
  %vm502 = vcmp.lt.s32.totalorder %v12, 112
  %v503 = vsel %vm502, %v499, %v501
  %v504 = vsel %vm502, %v497, %v499
  %v505 = vsel %vm502, %v495, %v497
  %v506 = vsel %vm502, %v501, %v495
  %v507 = vmul.f32 %v505, %v132
  %v508 = vmul.f32 %v504, %v133
  %v509 = vmul.f32 %v503, %v134
  %v510 = vmul.f32 %v506, %v135
  %511 = vset.pattern.permute.xlu0 7
  %512 = vperm.xlu0 %511, %v180
  %v513 = vpop.permute.xlu0 %512
  %v515 = vmul.f32 %v507, %v513
  %v516 = vmul.f32 %v508, %v513
  %v517 = vmul.f32 %v509, %v513
  %v518 = vmul.f32 %v510, %v513
  %v523 = vrot.slane %v516, 4
  %v524 = vrot.slane %v518, 4
  %v525 = vsel %vm236, %v515, %v523
  %v526 = vsel %vm236, %v517, %v524
  %v529 = vadd.f32 %v481, %v525
  %v530 = vadd.f32 %v482, %v526
  %531 = vst [vmem:[#allocation1] ss:$2 sm:$0xff] %v176
  %s532 = scalar_lea.vmem [#allocation1], 16
  %533 = vst [vmem:[%s532] ss:$2 sm:$0xff] %v177
  %v534 = vld.sshfl [vmem:[#allocation1] sm:$0xff pattern:$0x75316420]
  %v535 = vld.sshfl [vmem:[#allocation1 + $0x8] sm:$0xff pattern:$0x75316420]
  %v536 = vld.sshfl [vmem:[#allocation1 + $0x10] sm:$0xff pattern:$0x75316420]
  %v537 = vld.sshfl [vmem:[#allocation1 + $0x18] sm:$0xff pattern:$0x75316420]
  %542 = vrot.lane.b32.xlu0 %v534, 111
  %v543 = vpop.permute.xlu0 %542
  %544 = vrot.lane.b32.xlu0 %v535, 111
  %v545 = vpop.permute.xlu0 %544
  %546 = vrot.lane.b32.xlu0 %v536, 111
  %v547 = vpop.permute.xlu0 %546
  %548 = vrot.lane.b32.xlu0 %v537, 111
  %v549 = vpop.permute.xlu0 %548
  %vm550 = vcmp.lt.s32.totalorder %v12, 111
  %v551 = vsel %vm550, %v547, %v549
  %v552 = vsel %vm550, %v545, %v547
  %v553 = vsel %vm550, %v543, %v545
  %v554 = vsel %vm550, %v549, %v543
  %v555 = vmul.f32 %v553, %v172
  %v556 = vmul.f32 %v552, %v173
  %v557 = vmul.f32 %v551, %v174
  %v558 = vmul.f32 %v554, %v175
  %559 = vset.pattern.permute.xlu0 8
  %560 = vperm.xlu0 %559, %v180
  %v561 = vpop.permute.xlu0 %560
  %v563 = vmul.f32 %v555, %v561
  %v564 = vmul.f32 %v556, %v561
  %v565 = vmul.f32 %v557, %v561
  %v566 = vmul.f32 %v558, %v561
  %v571 = vrot.slane %v564, 4
  %v572 = vrot.slane %v566, 4
  %v573 = vsel %vm236, %v563, %v571
  %v574 = vsel %vm236, %v565, %v572
  %v577 = vadd.f32 %v529, %v573
  %v578 = vadd.f32 %v530, %v574
  %v579 = vld [vmem:[%s1] sm:$0x3]
  %581 = vset.pattern.permute.xlu0 9
  %582 = vperm.xlu0 %581, %v579
  %v583 = vpop.permute.xlu0 %582
  %v585 = vunpack.c.l.s4 839922192
  %v586 = vunpack.c.0.s8 %v585
  %v587 = vperm.slane %v583, %v586
  %v589 = vadd.f32 %v577, %v587
  %v590 = vadd.f32 %v578, %v587
  %593 = vst [vmem:[#allocation1] ss:$2 sm:$0xff] %v589
  %s594 = scalar_lea.vmem [#allocation1], 16
  %595 = vst [vmem:[%s594] ss:$2 sm:$0xff] %v590
  %v596 = vld.sshfl [vmem:[#allocation1] sm:$0xff pattern:$0x75316420]
  %v597 = vld.sshfl [vmem:[#allocation1 + $0x8] sm:$0xff pattern:$0x75316420]
  %v598 = vld.sshfl [vmem:[#allocation1 + $0x10] sm:$0xff pattern:$0x75316420]
  %v599 = vld.sshfl [vmem:[#allocation1 + $0x18] sm:$0xff pattern:$0x75316420]
  %vm604 = vcmask 1041408
  %v605 = vsel %vm604, %v596, 0.0
  %v606 = vsel %vm604, %v597, 0.0
  %v607 = vadd.f32 %v605, %v606
  %v608 = vsel %vm604, %v598, 0.0
  %v609 = vadd.f32 %v607, %v608
  %v610 = vsel %vm604, %v599, 0.0
  %v611 = vadd.f32 %v609, %v610
  %612 = vadd.xlane.f32.xlu0 %v611
  %v613 = vpop.xlane.xlu0 %612
  %v614 = vrcp.pop 512.0
  %v615 = vmul.f32 512.0, %v614
  %v616 = vsub.f32 1.0, %v615
  %v617 = vmul.f32 %v614, %v616
  %v618 = vadd.f32 %v614, %v617
  %vm619 = vweird.f32 %v614
  %v620 = vsel %vm619, %v614, %v618
  %v621 = vmul.f32 %v613, %v620
  %v622 = vmul.f32 %v589, %v589
  %v623 = vmul.f32 %v590, %v590
  %626 = vst [vmem:[#allocation1] ss:$2 sm:$0xff] %v622
  %s627 = scalar_lea.vmem [#allocation1], 16
  %628 = vst [vmem:[%s627] ss:$2 sm:$0xff] %v623
  %v629 = vld.sshfl [vmem:[#allocation1] sm:$0xff pattern:$0x75316420]
  %v630 = vld.sshfl [vmem:[#allocation1 + $0x8] sm:$0xff pattern:$0x75316420]
  %v631 = vld.sshfl [vmem:[#allocation1 + $0x10] sm:$0xff pattern:$0x75316420]
  %v632 = vld.sshfl [vmem:[#allocation1 + $0x18] sm:$0xff pattern:$0x75316420]
  %v637 = vsel %vm604, %v629, 0.0
  %v638 = vsel %vm604, %v630, 0.0
  %v639 = vadd.f32 %v637, %v638
  %v640 = vsel %vm604, %v631, 0.0
  %v641 = vadd.f32 %v639, %v640
  %v642 = vsel %vm604, %v632, 0.0
  %v643 = vadd.f32 %v641, %v642
  %644 = vadd.xlane.f32.xlu0 %v643
  %v645 = vpop.xlane.xlu0 %644
  %v646 = vmul.f32 %v645, %v620
  %v647 = vmul.f32 %v621, %v621
  %v648 = vsub.f32 %v646, %v647
  %v649 = vmax.f32 %v648, 0.0
  %v650 = vld [vmem:[%s1] sm:$0x3]
  %v651 = vadd.f32 %v649, 1e-05
  %v652 = vrsqrt.pop %v651
  %v653 = vmul.f32 %v652, %v651
  %v654 = vmul.f32 %v653, %v652
  %v655 = vmul.f32 0.5, %v654
  %v656 = vsub.f32 1.5, %v655
  %v657 = vmul.f32 %v652, %v656
  %vm658 = vweird.f32 %v651
  %vm659 = vweird.f32 %v652
  %vm660 = vmor %vm658, %vm659
  %v661 = vsel %vm660, %v652, %v657
  %v662 = vmul.f32 %v650, %v661
  %v663 = vmul.f32 %v621, %v662
  %665 = vrot.lane.b32.xlu0 %v663, 1
  %v666 = vpop.permute.xlu0 %665
  %v668 = vsub.f32 %v650, %v666
  %670 = vset.pattern.permute.xlu0 10
  %671 = vperm.xlu0 %670, %v662
  %v672 = vpop.permute.xlu0 %671
  %674 = vst [vmem:[#allocation1] ss:$2 sm:$0xff] %v589
  %s675 = scalar_lea.vmem [#allocation1], 16
  %676 = vst [vmem:[%s675] ss:$2 sm:$0xff] %v590
  %v677 = vld.sshfl [vmem:[#allocation1] sm:$0xff pattern:$0x75316420]
  %v678 = vld.sshfl [vmem:[#allocation1 + $0x8] sm:$0xff pattern:$0x75316420]
  %v679 = vld.sshfl [vmem:[#allocation1 + $0x10] sm:$0xff pattern:$0x75316420]
  %v680 = vld.sshfl [vmem:[#allocation1 + $0x18] sm:$0xff pattern:$0x75316420]
  %v685 = vmul.f32 %v672, %v677
  %v686 = vmul.f32 %v672, %v678
  %v687 = vmul.f32 %v672, %v679
  %v688 = vmul.f32 %v672, %v680
  %690 = vset.pattern.permute.xlu0 11
  %691 = vperm.xlu0 %690, %v668
  %v692 = vpop.permute.xlu0 %691
  %v694 = vadd.f32 %v685, %v692
  %v695 = vadd.f32 %v686, %v692
  %v696 = vadd.f32 %v687, %v692
  %v697 = vadd.f32 %v688, %v692
  %v698 = vld [vmem:[%s1] sm:$0x3]
  %700 = vset.pattern.permute.xlu0 14
  %701 = vperm.xlu0 %700, %v698
  %v702 = vpop.permute.xlu0 %701
  %v706 = vperm.slane %v178, 2
  %v707 = vperm.slane %v178, 6
  %v708 = vperm.slane %v179, 2
  %v709 = vperm.slane %v179, 6
  %v714 = vperm.slane %v706, 2
  %v715 = vperm.slane %v707, 2
  %v716 = vperm.slane %v708, 2
  %v717 = vperm.slane %v709, 2
  %v718 = vmul.f32 %v702, %v714
  %v719 = vmul.f32 %v702, %v715
  %v720 = vmul.f32 %v702, %v716
  %v721 = vmul.f32 %v702, %v717
  %722 = vset.pattern.permute.xlu0 15
  %723 = vperm.xlu0 %722, %v698
  %v724 = vpop.permute.xlu0 %723
  %v726 = vperm.slane %v178, 3
  %v727 = vperm.slane %v178, 7
  %v728 = vperm.slane %v179, 3
  %v729 = vperm.slane %v179, 7
  %v734 = vperm.slane %v726, 3
  %v735 = vperm.slane %v727, 3
  %v736 = vperm.slane %v728, 3
  %v737 = vperm.slane %v729, 3
  %v738 = vmul.f32 %v724, %v734
  %v739 = vmul.f32 %v724, %v735
  %v740 = vmul.f32 %v724, %v736
  %v741 = vmul.f32 %v724, %v737
  %v742 = vadd.f32 %v718, %v738
  %v743 = vadd.f32 %v719, %v739
  %v744 = vadd.f32 %v720, %v740
  %v745 = vadd.f32 %v721, %v741
  %746 = vset.pattern.permute.xlu0 16
  %747 = vperm.xlu0 %746, %v698
  %v748 = vpop.permute.xlu0 %747
  %v750 = vadd.f32 %v742, %v748
  %v751 = vadd.f32 %v743, %v748
  %v752 = vadd.f32 %v744, %v748
  %v753 = vadd.f32 %v745, %v748
  %v754 = vsel %vm604, %v750, 0.0
  %v755 = vsel %vm604, %v751, 0.0
  %v756 = vadd.f32 %v754, %v755
  %v757 = vsel %vm604, %v752, 0.0
  %v758 = vadd.f32 %v756, %v757
  %v759 = vsel %vm604, %v753, 0.0
  %v760 = vadd.f32 %v758, %v759
  %761 = vadd.xlane.f32.xlu0 %v760
  %v762 = vpop.xlane.xlu0 %761
  %v763 = vmul.f32 %v762, %v620
  %v764 = vmul.f32 %v750, %v750
  %v765 = vmul.f32 %v751, %v751
  %v766 = vmul.f32 %v752, %v752
  %v767 = vmul.f32 %v753, %v753
  %v768 = vsel %vm604, %v764, 0.0
  %v769 = vsel %vm604, %v765, 0.0
  %v770 = vadd.f32 %v768, %v769
  %v771 = vsel %vm604, %v766, 0.0
  %v772 = vadd.f32 %v770, %v771
  %v773 = vsel %vm604, %v767, 0.0
  %v774 = vadd.f32 %v772, %v773
  %775 = vadd.xlane.f32.xlu0 %v774
  %v776 = vpop.xlane.xlu0 %775
  %v777 = vmul.f32 %v776, %v620
  %v778 = vmul.f32 %v763, %v763
  %v779 = vsub.f32 %v777, %v778
  %v780 = vmax.f32 %v779, 0.0
  %v781 = vadd.f32 %v780, 1e-05
  %v782 = vrsqrt.pop %v781
  %v783 = vmul.f32 %v782, %v781
  %v784 = vmul.f32 %v783, %v782
  %v785 = vmul.f32 0.5, %v784
  %v786 = vsub.f32 1.5, %v785
  %v787 = vmul.f32 %v782, %v786
  %vm788 = vweird.f32 %v781
  %vm789 = vweird.f32 %v782
  %vm790 = vmor %vm788, %vm789
  %v791 = vsel %vm790, %v782, %v787
  %v792 = vmul.f32 %v698, %v791
  %v793 = vmul.f32 %v763, %v792
  %795 = vrot.lane.b32.xlu0 %v793, 1
  %v796 = vpop.permute.xlu0 %795
  %v798 = vsub.f32 %v698, %v796
  %800 = vset.pattern.permute.xlu0 17
  %801 = vperm.xlu0 %800, %v792
  %v802 = vpop.permute.xlu0 %801
  %v804 = vmul.f32 %v750, %v802
  %v805 = vmul.f32 %v751, %v802
  %v806 = vmul.f32 %v752, %v802
  %v807 = vmul.f32 %v753, %v802
  %809 = vset.pattern.permute.xlu0 18
  %810 = vperm.xlu0 %809, %v798
  %v811 = vpop.permute.xlu0 %810
  %v813 = vadd.f32 %v804, %v811
  %v814 = vadd.f32 %v805, %v811
  %v815 = vadd.f32 %v806, %v811
  %v816 = vadd.f32 %v807, %v811
  %v817 = vsub.f32 0.0, %v813
  %v818 = vsub.f32 0.0, %v814
  %v819 = vsub.f32 0.0, %v815
  %v820 = vsub.f32 0.0, %v816
  %v821 = vmul.f32 %v817, 1.442695
  %v822 = vpow.pop %v821
  %v823 = vmul.f32 %v818, 1.442695
  %v824 = vpow.pop %v823
  %v825 = vmul.f32 %v819, 1.442695
  %v826 = vpow.pop %v825
  %v827 = vmul.f32 %v820, 1.442695
  %v828 = vpow.pop %v827
  %v829 = vadd.f32 %v822, 1.0
  %v830 = vadd.f32 %v824, 1.0
  %v831 = vadd.f32 %v826, 1.0
  %v832 = vadd.f32 %v828, 1.0
  %v833 = vrcp.pop %v829
  %v834 = vrcp.pop %v830
  %v835 = vrcp.pop %v831
  %v836 = vrcp.pop %v832
  %v837 = vmul.f32 %v813, %v833
  %v838 = vmul.f32 %v814, %v834
  %v839 = vmul.f32 %v815, %v835
  %v840 = vmul.f32 %v816, %v836
  %841 = vset.pattern.permute.xlu0 23
  %842 = vperm.xlu0 %841, %v698
  %v843 = vpop.permute.xlu0 %842
  %v845 = vmul.f32 %v837, %v843
  %v846 = vmul.f32 %v838, %v843
  %v847 = vmul.f32 %v839, %v843
  %v848 = vmul.f32 %v840, %v843
  %849 = vrot.lane.b32.xlu0 %v837, 17
  %v850 = vpop.permute.xlu0 %849
  %851 = vrot.lane.b32.xlu0 %v838, 17
  %v852 = vpop.permute.xlu0 %851
  %853 = vrot.lane.b32.xlu0 %v839, 17
  %v854 = vpop.permute.xlu0 %853
  %855 = vrot.lane.b32.xlu0 %v840, 17
  %v856 = vpop.permute.xlu0 %855
  %v857 = vsel %vm213, %v854, %v856
  %v858 = vsel %vm213, %v852, %v854
  %v859 = vsel %vm213, %v850, %v852
  %v860 = vsel %vm213, %v856, %v850
  %v861 = vmul.f32 %v860, %v160
  %v862 = vmul.f32 %v859, %v161
  %v863 = vmul.f32 %v858, %v162
  %v864 = vmul.f32 %v857, %v163
  %865 = vset.pattern.permute.xlu0 19
  %866 = vperm.xlu0 %865, %v698
  %v867 = vpop.permute.xlu0 %866
  %v869 = vmul.f32 %v861, %v867
  %v870 = vmul.f32 %v862, %v867
  %v871 = vmul.f32 %v863, %v867
  %v872 = vmul.f32 %v864, %v867
  %v873 = vadd.f32 %v845, %v869
  %v874 = vadd.f32 %v846, %v870
  %v875 = vadd.f32 %v847, %v871
  %v876 = vadd.f32 %v848, %v872
  %877 = vrot.lane.b32.xlu0 %v837, 16
  %v878 = vpop.permute.xlu0 %877
  %879 = vrot.lane.b32.xlu0 %v838, 16
  %v880 = vpop.permute.xlu0 %879
  %881 = vrot.lane.b32.xlu0 %v839, 16
  %v882 = vpop.permute.xlu0 %881
  %883 = vrot.lane.b32.xlu0 %v840, 16
  %v884 = vpop.permute.xlu0 %883
  %v885 = vsel %vm262, %v882, %v884
  %v886 = vsel %vm262, %v880, %v882
  %v887 = vsel %vm262, %v878, %v880
  %v888 = vsel %vm262, %v884, %v878
  %v889 = vmul.f32 %v888, %v120
  %v890 = vmul.f32 %v887, %v121
  %v891 = vmul.f32 %v886, %v122
  %v892 = vmul.f32 %v885, %v123
  %893 = vset.pattern.permute.xlu0 20
  %894 = vperm.xlu0 %893, %v698
  %v895 = vpop.permute.xlu0 %894
  %v897 = vmul.f32 %v889, %v895
  %v898 = vmul.f32 %v890, %v895
  %v899 = vmul.f32 %v891, %v895
  %v900 = vmul.f32 %v892, %v895
  %v901 = vadd.f32 %v873, %v897
  %v902 = vadd.f32 %v874, %v898
  %v903 = vadd.f32 %v875, %v899
  %v904 = vadd.f32 %v876, %v900
  %905 = vrot.lane.b32.xlu0 %v837, 15
  %v906 = vpop.permute.xlu0 %905
  %907 = vrot.lane.b32.xlu0 %v838, 15
  %v908 = vpop.permute.xlu0 %907
  %909 = vrot.lane.b32.xlu0 %v839, 15
  %v910 = vpop.permute.xlu0 %909
  %911 = vrot.lane.b32.xlu0 %v840, 15
  %v912 = vpop.permute.xlu0 %911
  %v913 = vsel %vm310, %v910, %v912
  %v914 = vsel %vm310, %v908, %v910
  %v915 = vsel %vm310, %v906, %v908
  %v916 = vsel %vm310, %v912, %v906
  %v917 = vmul.f32 %v916, %v164
  %v918 = vmul.f32 %v915, %v165
  %v919 = vmul.f32 %v914, %v166
  %v920 = vmul.f32 %v913, %v167
  %921 = vset.pattern.permute.xlu0 21
  %922 = vperm.xlu0 %921, %v698
  %v923 = vpop.permute.xlu0 %922
  %v925 = vmul.f32 %v917, %v923
  %v926 = vmul.f32 %v918, %v923
  %v927 = vmul.f32 %v919, %v923
  %v928 = vmul.f32 %v920, %v923
  %v929 = vadd.f32 %v901, %v925
  %v930 = vadd.f32 %v902, %v926
  %v931 = vadd.f32 %v903, %v927
  %v932 = vadd.f32 %v904, %v928
  %933 = vrot.lane.b32.xlu0 %v837, 1
  %v934 = vpop.permute.xlu0 %933
  %935 = vrot.lane.b32.xlu0 %v838, 1
  %v936 = vpop.permute.xlu0 %935
  %937 = vrot.lane.b32.xlu0 %v839, 1
  %v938 = vpop.permute.xlu0 %937
  %939 = vrot.lane.b32.xlu0 %v840, 1
  %v940 = vpop.permute.xlu0 %939
  %v941 = vsel %vm358, %v938, %v940
  %v942 = vsel %vm358, %v936, %v938
  %v943 = vsel %vm358, %v934, %v936
  %v944 = vsel %vm358, %v940, %v934
  %v945 = vmul.f32 %v944, %v144
  %v946 = vmul.f32 %v943, %v145
  %v947 = vmul.f32 %v942, %v146
  %v948 = vmul.f32 %v941, %v147
  %949 = vset.pattern.permute.xlu0 22
  %950 = vperm.xlu0 %949, %v698
  %v951 = vpop.permute.xlu0 %950
  %v953 = vmul.f32 %v945, %v951
  %v954 = vmul.f32 %v946, %v951
  %v955 = vmul.f32 %v947, %v951
  %v956 = vmul.f32 %v948, %v951
  %v957 = vadd.f32 %v929, %v953
  %v958 = vadd.f32 %v930, %v954
  %v959 = vadd.f32 %v931, %v955
  %v960 = vadd.f32 %v932, %v956
  %961 = vrot.lane.b32.xlu0 %v837, 127
  %v962 = vpop.permute.xlu0 %961
  %963 = vrot.lane.b32.xlu0 %v838, 127
  %v964 = vpop.permute.xlu0 %963
  %965 = vrot.lane.b32.xlu0 %v839, 127
  %v966 = vpop.permute.xlu0 %965
  %967 = vrot.lane.b32.xlu0 %v840, 127
  %v968 = vpop.permute.xlu0 %967
  %v969 = vsel %vm406, %v966, %v968
  %v970 = vsel %vm406, %v964, %v966
  %v971 = vsel %vm406, %v962, %v964
  %v972 = vsel %vm406, %v968, %v962
  %v973 = vmul.f32 %v971, %v156
  %v974 = vmul.f32 %v970, %v157
  %v975 = vmul.f32 %v969, %v158
  %v976 = vmul.f32 %v972, %v159
  %977 = vset.pattern.permute.xlu0 24
  %978 = vperm.xlu0 %977, %v698
  %v979 = vpop.permute.xlu0 %978
  %v981 = vmul.f32 %v973, %v979
  %v982 = vmul.f32 %v974, %v979
  %v983 = vmul.f32 %v975, %v979
  %v984 = vmul.f32 %v976, %v979
  %v985 = vadd.f32 %v957, %v981
  %v986 = vadd.f32 %v958, %v982
  %v987 = vadd.f32 %v959, %v983
  %v988 = vadd.f32 %v960, %v984
  %989 = vrot.lane.b32.xlu0 %v837, 113
  %v990 = vpop.permute.xlu0 %989
  %991 = vrot.lane.b32.xlu0 %v838, 113
  %v992 = vpop.permute.xlu0 %991
  %993 = vrot.lane.b32.xlu0 %v839, 113
  %v994 = vpop.permute.xlu0 %993
  %995 = vrot.lane.b32.xlu0 %v840, 113
  %v996 = vpop.permute.xlu0 %995
  %v997 = vsel %vm454, %v994, %v996
  %v998 = vsel %vm454, %v992, %v994
  %v999 = vsel %vm454, %v990, %v992
  %v1000 = vsel %vm454, %v996, %v990
  %v1001 = vmul.f32 %v999, %v168
  %v1002 = vmul.f32 %v998, %v169
  %v1003 = vmul.f32 %v997, %v170
  %v1004 = vmul.f32 %v1000, %v171
  %1005 = vset.pattern.permute.xlu0 25
  %1006 = vperm.xlu0 %1005, %v698
  %v1007 = vpop.permute.xlu0 %1006
  %v1009 = vmul.f32 %v1001, %v1007
  %v1010 = vmul.f32 %v1002, %v1007
  %v1011 = vmul.f32 %v1003, %v1007
  %v1012 = vmul.f32 %v1004, %v1007
  %v1013 = vadd.f32 %v985, %v1009
  %v1014 = vadd.f32 %v986, %v1010
  %v1015 = vadd.f32 %v987, %v1011
  %v1016 = vadd.f32 %v988, %v1012
  %1017 = vrot.lane.b32.xlu0 %v837, 112
  %v1018 = vpop.permute.xlu0 %1017
  %1019 = vrot.lane.b32.xlu0 %v838, 112
  %v1020 = vpop.permute.xlu0 %1019
  %1021 = vrot.lane.b32.xlu0 %v839, 112
  %v1022 = vpop.permute.xlu0 %1021
  %1023 = vrot.lane.b32.xlu0 %v840, 112
  %v1024 = vpop.permute.xlu0 %1023
  %v1025 = vsel %vm502, %v1022, %v1024
  %v1026 = vsel %vm502, %v1020, %v1022
  %v1027 = vsel %vm502, %v1018, %v1020
  %v1028 = vsel %vm502, %v1024, %v1018
  %v1029 = vmul.f32 %v1027, %v132
  %v1030 = vmul.f32 %v1026, %v133
  %v1031 = vmul.f32 %v1025, %v134
  %v1032 = vmul.f32 %v1028, %v135
  %1033 = vset.pattern.permute.xlu0 26
  %1034 = vperm.xlu0 %1033, %v698
  %v1035 = vpop.permute.xlu0 %1034
  %v1037 = vmul.f32 %v1029, %v1035
  %v1038 = vmul.f32 %v1030, %v1035
  %v1039 = vmul.f32 %v1031, %v1035
  %v1040 = vmul.f32 %v1032, %v1035
  %v1041 = vadd.f32 %v1013, %v1037
  %v1042 = vadd.f32 %v1014, %v1038
  %v1043 = vadd.f32 %v1015, %v1039
  %v1044 = vadd.f32 %v1016, %v1040
  %1045 = vrot.lane.b32.xlu0 %v837, 111
  %v1046 = vpop.permute.xlu0 %1045
  %1047 = vrot.lane.b32.xlu0 %v838, 111
  %v1048 = vpop.permute.xlu0 %1047
  %1049 = vrot.lane.b32.xlu0 %v839, 111
  %v1050 = vpop.permute.xlu0 %1049
  %1051 = vrot.lane.b32.xlu0 %v840, 111
  %v1052 = vpop.permute.xlu0 %1051
  %v1053 = vsel %vm550, %v1050, %v1052
  %v1054 = vsel %vm550, %v1048, %v1050
  %v1055 = vsel %vm550, %v1046, %v1048
  %v1056 = vsel %vm550, %v1052, %v1046
  %v1057 = vmul.f32 %v1055, %v172
  %v1058 = vmul.f32 %v1054, %v173
  %v1059 = vmul.f32 %v1053, %v174
  %v1060 = vmul.f32 %v1056, %v175
  %1061 = vset.pattern.permute.xlu0 27
  %1062 = vperm.xlu0 %1061, %v698
  %v1063 = vpop.permute.xlu0 %1062
  %v1065 = vmul.f32 %v1057, %v1063
  %v1066 = vmul.f32 %v1058, %v1063
  %v1067 = vmul.f32 %v1059, %v1063
  %v1068 = vmul.f32 %v1060, %v1063
  %v1069 = vadd.f32 %v1041, %v1065
  %v1070 = vadd.f32 %v1042, %v1066
  %v1071 = vadd.f32 %v1043, %v1067
  %v1072 = vadd.f32 %v1044, %v1068
  %1073 = vset.pattern.permute.xlu0 28
  %1074 = vperm.xlu0 %1073, %v698
  %v1075 = vpop.permute.xlu0 %1074
  %v1077 = vadd.f32 %v1069, %v1075
  %v1078 = vadd.f32 %v1070, %v1075
  %v1079 = vadd.f32 %v1071, %v1075
  %v1080 = vadd.f32 %v1072, %v1075
  %v1081 = vsel %vm604, %v1077, 0.0
  %v1082 = vsel %vm604, %v1078, 0.0
  %v1083 = vadd.f32 %v1081, %v1082
  %v1084 = vsel %vm604, %v1079, 0.0
  %v1085 = vadd.f32 %v1083, %v1084
  %v1086 = vsel %vm604, %v1080, 0.0
  %v1087 = vadd.f32 %v1085, %v1086
  %1088 = vadd.xlane.f32.xlu0 %v1087
  %v1089 = vpop.xlane.xlu0 %1088
  %v1090 = vmul.f32 %v1089, %v620
  %v1091 = vmul.f32 %v1077, %v1077
  %v1092 = vmul.f32 %v1078, %v1078
  %v1093 = vmul.f32 %v1079, %v1079
  %v1094 = vmul.f32 %v1080, %v1080
  %v1095 = vsel %vm604, %v1091, 0.0
  %v1096 = vsel %vm604, %v1092, 0.0
  %v1097 = vadd.f32 %v1095, %v1096
  %v1098 = vsel %vm604, %v1093, 0.0
  %v1099 = vadd.f32 %v1097, %v1098
  %v1100 = vsel %vm604, %v1094, 0.0
  %v1101 = vadd.f32 %v1099, %v1100
  %1102 = vadd.xlane.f32.xlu0 %v1101
  %v1103 = vpop.xlane.xlu0 %1102
  %v1104 = vmul.f32 %v1103, %v620
  %v1105 = vmul.f32 %v1090, %v1090
  %v1106 = vsub.f32 %v1104, %v1105
  %v1107 = vmax.f32 %v1106, 0.0
  %v1108 = vadd.f32 %v1107, 1e-05
  %v1109 = vrsqrt.pop %v1108
  %v1110 = vmul.f32 %v1109, %v1108
  %v1111 = vmul.f32 %v1110, %v1109
  %v1112 = vmul.f32 0.5, %v1111
  %v1113 = vsub.f32 1.5, %v1112
  %v1114 = vmul.f32 %v1109, %v1113
  %vm1115 = vweird.f32 %v1108
  %vm1116 = vweird.f32 %v1109
  %vm1117 = vmor %vm1115, %vm1116
  %v1118 = vsel %vm1117, %v1109, %v1114
  %v1119 = vmul.f32 %v698, %v1118
  %v1120 = vmul.f32 %v1090, %v1119
  %1122 = vrot.lane.b32.xlu0 %v1120, 1
  %v1123 = vpop.permute.xlu0 %1122
  %v1125 = vsub.f32 %v698, %v1123
  %1127 = vset.pattern.permute.xlu0 29
  %1128 = vperm.xlu0 %1127, %v1119
  %v1129 = vpop.permute.xlu0 %1128
  %v1131 = vmul.f32 %v1129, %v1077
  %v1132 = vmul.f32 %v1129, %v1078
  %v1133 = vmul.f32 %v1129, %v1079
  %v1134 = vmul.f32 %v1129, %v1080
  %1136 = vset.pattern.permute.xlu0 30
  %1137 = vperm.xlu0 %1136, %v1125
  %v1138 = vpop.permute.xlu0 %1137
  %v1140 = vadd.f32 %v1131, %v1138
  %v1141 = vadd.f32 %v1132, %v1138
  %v1142 = vadd.f32 %v1133, %v1138
  %v1143 = vadd.f32 %v1134, %v1138
  %v1144 = vld [vmem:[%s1] sm:$0xff]
  %1146 = vset.pattern.permute.xlu0 12
  %1147 = vperm.xlu0 %1146, %v1144
  %v1148 = vpop.permute.xlu0 %1147
  %v1150 = vperm.slane %v694, 0
  %v1151 = vperm.slane %v695, 0
  %v1152 = vperm.slane %v696, 0
  %v1153 = vperm.slane %v697, 0
  %v1154 = vmul.f32 %v1148, %v1150
  %v1155 = vmul.f32 %v1148, %v1151
  %v1156 = vmul.f32 %v1148, %v1152
  %v1157 = vmul.f32 %v1148, %v1153
  %1158 = vset.pattern.permute.xlu0 31
  %1159 = vperm.xlu0 %1158, %v1144
  %v1160 = vpop.permute.xlu0 %1159
  %v1162 = vperm.slane %v1140, 0
  %v1163 = vperm.slane %v1141, 0
  %v1164 = vperm.slane %v1142, 0
  %v1165 = vperm.slane %v1143, 0
  %v1166 = vmul.f32 %v1160, %v1162
  %v1167 = vmul.f32 %v1160, %v1163
  %v1168 = vmul.f32 %v1160, %v1164
  %v1169 = vmul.f32 %v1160, %v1165
  %v1170 = vadd.f32 %v1154, %v1166
  %v1171 = vadd.f32 %v1155, %v1167
  %v1172 = vadd.f32 %v1156, %v1168
  %v1173 = vadd.f32 %v1157, %v1169
  %1174 = vset.pattern.permute.xlu0 13
  %1175 = vperm.xlu0 %1174, %v1144
  %v1176 = vpop.permute.xlu0 %1175
  %v1178 = vperm.slane %v694, 1
  %v1179 = vperm.slane %v695, 1
  %v1180 = vperm.slane %v696, 1
  %v1181 = vperm.slane %v697, 1
  %v1182 = vmul.f32 %v1176, %v1178
  %v1183 = vmul.f32 %v1176, %v1179
  %v1184 = vmul.f32 %v1176, %v1180
  %v1185 = vmul.f32 %v1176, %v1181
  %1186 = vset.pattern.permute.xlu0 32
  %1187 = vperm.xlu0 %1186, %v1144
  %v1188 = vpop.permute.xlu0 %1187
  %v1190 = vperm.slane %v1140, 1
  %v1191 = vperm.slane %v1141, 1
  %v1192 = vperm.slane %v1142, 1
  %v1193 = vperm.slane %v1143, 1
  %v1194 = vmul.f32 %v1188, %v1190
  %v1195 = vmul.f32 %v1188, %v1191
  %v1196 = vmul.f32 %v1188, %v1192
  %v1197 = vmul.f32 %v1188, %v1193
  %v1198 = vadd.f32 %v1182, %v1194
  %v1199 = vadd.f32 %v1183, %v1195
  %v1200 = vadd.f32 %v1184, %v1196
  %v1201 = vadd.f32 %v1185, %v1197
  %v1202 = vadd.f32 %v1170, %v1198
  %v1203 = vadd.f32 %v1171, %v1199
  %v1204 = vadd.f32 %v1172, %v1200
  %v1205 = vadd.f32 %v1173, %v1201
  %1206 = vset.pattern.permute.xlu0 33
  %1207 = vperm.xlu0 %1206, %v1144
  %v1208 = vpop.permute.xlu0 %1207
  %v1210 = vadd.f32 %v1202, %v1208
  %v1211 = vadd.f32 %v1203, %v1208
  %v1212 = vadd.f32 %v1204, %v1208
  %v1213 = vadd.f32 %v1205, %v1208
  %v1214 = vadd.f32 %v1210, %v1211
  %v1215 = vadd.f32 %v1214, %v1212
  %v1216 = vadd.f32 %v1215, %v1213
  %1217 = vadd.xlane.f32.xlu0 %v1216
  %v1218 = vpop.xlane.xlu0 %1217
  %v1219 = vmul.f32 %v1218, %v620
  %v1220 = vmul.f32 %v1210, %v1210
  %v1221 = vmul.f32 %v1211, %v1211
  %v1222 = vmul.f32 %v1212, %v1212
  %v1223 = vmul.f32 %v1213, %v1213
  %v1224 = vadd.f32 %v1220, %v1221
  %v1225 = vadd.f32 %v1224, %v1222
  %v1226 = vadd.f32 %v1225, %v1223
  %1227 = vadd.xlane.f32.xlu0 %v1226
  %v1228 = vpop.xlane.xlu0 %1227
  %v1229 = vmul.f32 %v1228, %v620
  %v1230 = vmul.f32 %v1219, %v1219
  %v1231 = vsub.f32 %v1229, %v1230
  %v1232 = vmax.f32 %v1231, 0.0
  %v1233 = vadd.f32 %v1232, 1e-05
  %v1234 = vrsqrt.pop %v1233
  %v1235 = vmul.f32 %v1234, %v1233
  %v1236 = vmul.f32 %v1235, %v1234
  %v1237 = vmul.f32 0.5, %v1236
  %v1238 = vsub.f32 1.5, %v1237
  %v1239 = vmul.f32 %v1234, %v1238
  %vm1240 = vweird.f32 %v1233
  %vm1241 = vweird.f32 %v1234
  %vm1242 = vmor %vm1240, %vm1241
  %v1243 = vsel %vm1242, %v1234, %v1239
  %v1244 = vmul.f32 %v1144, %v1243
  %v1245 = vmul.f32 %v1219, %v1244
  %1247 = vrot.lane.b32.xlu0 %v1245, 1
  %v1248 = vpop.permute.xlu0 %1247
  %v1250 = vsub.f32 %v1144, %v1248
  %1252 = vset.pattern.permute.xlu0 34
  %1253 = vperm.xlu0 %1252, %v1244
  %v1254 = vpop.permute.xlu0 %1253
  %v1256 = vmul.f32 %v1210, %v1254
  %v1257 = vmul.f32 %v1211, %v1254
  %v1258 = vmul.f32 %v1212, %v1254
  %v1259 = vmul.f32 %v1213, %v1254
  %1261 = vset.pattern.permute.xlu0 35
  %1262 = vperm.xlu0 %1261, %v1250
  %v1263 = vpop.permute.xlu0 %1262
  %v1265 = vadd.f32 %v1256, %v1263
  %v1266 = vadd.f32 %v1257, %v1263
  %v1267 = vadd.f32 %v1258, %v1263
  %v1268 = vadd.f32 %v1259, %v1263
  %v1269 = vsub.f32 0.0, %v1265
  %v1270 = vsub.f32 0.0, %v1266
  %v1271 = vsub.f32 0.0, %v1267
  %v1272 = vsub.f32 0.0, %v1268
  %v1273 = vmul.f32 %v1269, 1.442695
  %v1274 = vpow.pop %v1273
  %v1275 = vmul.f32 %v1270, 1.442695
  %v1276 = vpow.pop %v1275
  %v1277 = vmul.f32 %v1271, 1.442695
  %v1278 = vpow.pop %v1277
  %v1279 = vmul.f32 %v1272, 1.442695
  %v1280 = vpow.pop %v1279
  %v1281 = vadd.f32 %v1274, 1.0
  %v1282 = vadd.f32 %v1276, 1.0
  %v1283 = vadd.f32 %v1278, 1.0
  %v1284 = vadd.f32 %v1280, 1.0
  %v1285 = vrcp.pop %v1281
  %v1286 = vmul.f32 %v1281, %v1285
  %v1287 = vsub.f32 1.0, %v1286
  %v1288 = vmul.f32 %v1285, %v1287
  %v1289 = vadd.f32 %v1285, %v1288
  %vm1290 = vweird.f32 %v1281
  %vm1291 = vweird.f32 %v1285
  %vm1292 = vmor %vm1290, %vm1291
  %v1293 = vsel %vm1292, %v1285, %v1289
  %v1294 = vand.u32 2147483647, %v1281
  %vm1295 = vcmp.eq.f32.partialorder %v1294, 8.507059e+37
  %v1296 = vand.u32 %v1281, 2147483648
  %v1297 = vor.u32 1.1754944e-38, %v1296
  %v1298 = vsel %vm1295, %v1297, %v1293
  %v1299 = vrcp.pop %v1282
  %v1300 = vmul.f32 %v1282, %v1299
  %v1301 = vsub.f32 1.0, %v1300
  %v1302 = vmul.f32 %v1299, %v1301
  %v1303 = vadd.f32 %v1299, %v1302
  %vm1304 = vweird.f32 %v1282
  %vm1305 = vweird.f32 %v1299
  %vm1306 = vmor %vm1304, %vm1305
  %v1307 = vsel %vm1306, %v1299, %v1303
  %v1308 = vand.u32 2147483647, %v1282
  %vm1309 = vcmp.eq.f32.partialorder %v1308, 8.507059e+37
  %v1310 = vand.u32 %v1282, 2147483648
  %v1311 = vor.u32 1.1754944e-38, %v1310
  %v1312 = vsel %vm1309, %v1311, %v1307
  %v1313 = vrcp.pop %v1283
  %v1314 = vmul.f32 %v1283, %v1313
  %v1315 = vsub.f32 1.0, %v1314
  %v1316 = vmul.f32 %v1313, %v1315
  %v1317 = vadd.f32 %v1313, %v1316
  %vm1318 = vweird.f32 %v1283
  %vm1319 = vweird.f32 %v1313
  %vm1320 = vmor %vm1318, %vm1319
  %v1321 = vsel %vm1320, %v1313, %v1317
  %v1322 = vand.u32 2147483647, %v1283
  %vm1323 = vcmp.eq.f32.partialorder %v1322, 8.507059e+37
  %v1324 = vand.u32 %v1283, 2147483648
  %v1325 = vor.u32 1.1754944e-38, %v1324
  %v1326 = vsel %vm1323, %v1325, %v1321
  %v1327 = vrcp.pop %v1284
  %v1328 = vmul.f32 %v1284, %v1327
  %v1329 = vsub.f32 1.0, %v1328
  %v1330 = vmul.f32 %v1327, %v1329
  %v1331 = vadd.f32 %v1327, %v1330
  %vm1332 = vweird.f32 %v1284
  %vm1333 = vweird.f32 %v1327
  %vm1334 = vmor %vm1332, %vm1333
  %v1335 = vsel %vm1334, %v1327, %v1331
  %v1336 = vand.u32 2147483647, %v1284
  %vm1337 = vcmp.eq.f32.partialorder %v1336, 8.507059e+37
  %v1338 = vand.u32 %v1284, 2147483648
  %v1339 = vor.u32 1.1754944e-38, %v1338
  %v1340 = vsel %vm1337, %v1339, %v1335
  %v1341 = vmul.f32 %v1265, %v1298
  %v1342 = vmul.f32 %v1266, %v1312
  %v1343 = vmul.f32 %v1267, %v1326
  %v1344 = vmul.f32 %v1268, %v1340
  %1345 = vst [vmem:[%s2] sm:$0xff] %v1341
  %1346 = vst [vmem:[%s2 + $0x8] sm:$0xff] %v1342
  %1347 = vst [vmem:[%s2 + $0x10] sm:$0xff] %v1343
  %1348 = vst [vmem:[%s2 + $0x18] sm:$0xff] %v1344
  // Predicated region
  $region10: #{residual_bottleneck.1} parent=0 // pred_check
    _
  $region11: #{residual_bottleneck.1} parent=0 // pred_check_branch
    %1350 = sbr.rel (0) target = $region13
  $region12: #{residual_bottleneck.1} parent=0 // pred_region
    _
  $region13: #{residual_bottleneck.1} parent=0 // pred_fallthru
    _
  // Predicated region
  $region14: #{residual_bottleneck.1} parent=0 // pred_check
    _
  $region15: #{residual_bottleneck.1} parent=0 // pred_check_branch
    %1352 = sbr.rel (0) target = $region17
  $region16: #{residual_bottleneck.1} parent=0 // pred_region
    _
  $region17: #{residual_bottleneck.1} parent=0 // pred_fallthru
    _

</llo_original>
